<compile_context>
chip_gen: v7x
topology: tpu7x:2x2x1
jax: 0.10.0
libtpu: 0.0.40
codegen_flags: <defaults>
</compile_context>

<pallas_src>
import functools

import jax
import jax.numpy as jnp
from jax.experimental import pallas as pl
from jax.experimental.pallas import tpu as pltpu


def _gru_kernel(src_ref, dst_ref,                       # scalar-prefetch (SMEM int32 [E_pad])
                x_ref, h_ref, ef_ref,                   # X [N,Cin], H [N,C], EF tile [ET,De]
                wmx_ref, wmzr_ref, wmc_ref,             # msg weights: x(3C), h z/r(2C), h cand(C)
                wedge_ref,                              # fused edge weights [De, 6C]
                wsx_ref, wszr_ref, wsc_ref,             # skip weights: x(3C), h z/r(2C), h cand(C)
                bias_ref,                               # fused skip biases [1, 6C]
                out_ref,                                # H_new [N, C]
                acc_ref, hr_ref, z_ref, gx_ref, gh_ref, msg_ref,
                *, num_edges):
    f32 = jnp.float32
    C = out_ref.shape[1]
    ET = gx_ref.shape[0]

    p = pl.program_id(0)            # 0: x-path + h z/r path + all EF terms;  1: (H*R) path
    e = pl.program_id(1)            # edge-tile index
    n_et = pl.num_programs(1)
    e0 = e * ET

    # Per-row validity of this edge tile (padded edges contribute zero messages).
    eid = jax.lax.broadcasted_iota(jnp.int32, (ET, 1), 0) + e0
    valid = (eid < num_edges).astype(f32)

    @pl.when((p == 0) & (e == 0))
    def _init():
        acc_ref[...] = jnp.zeros_like(acc_ref)

    # ------------- phase 0: scatter_dst(X[src]@Wm_x || H[src]@Wm_hzr  +  EF@We_all) -------------
    @pl.when(p == 0)
    def _phase0():
        def gather(i, carry):
            s = src_ref[e0 + i]
            gx_ref[pl.ds(i, 1), :] = x_ref[pl.ds(s, 1), :]
            gh_ref[pl.ds(i, 1), :] = h_ref[pl.ds(s, 1), :]
            return carry
        jax.lax.fori_loop(0, ET, gather, 0)

        mx = jnp.dot(gx_ref[...] * valid, wmx_ref[...], preferred_element_type=f32)    # [ET, 3C]
        mh = jnp.dot(gh_ref[...] * valid, wmzr_ref[...], preferred_element_type=f32)   # [ET, 2C]
        me = jnp.dot(ef_ref[...] * valid, wedge_ref[...], preferred_element_type=f32)  # [ET, 6C]
        msg_ref[...] = me
        msg_ref[:, 0:3 * C] += mx
        msg_ref[:, 3 * C:5 * C] += mh

        def scatter(i, carry):
            d = dst_ref[e0 + i]
            acc_ref[pl.ds(d, 1), :] += msg_ref[pl.ds(i, 1), :]
            return carry
        jax.lax.fori_loop(0, ET, scatter, 0)

    # ------------- end of phase 0: add skip/bias terms, compute Z, R, H*R ------------------------
    @pl.when((p == 0) & (e == n_et - 1))
    def _finish_phase0():
        X = x_ref[...]
        H = h_ref[...]
        b = bias_ref[...]
        acc_ref[:, 0:3 * C] += (jnp.dot(X, wsx_ref[...], preferred_element_type=f32)
                                + b[:, 0:3 * C])
        acc_ref[:, 3 * C:5 * C] += (jnp.dot(H, wszr_ref[...], preferred_element_type=f32)
                                    + b[:, 3 * C:5 * C])
        Z = jax.nn.sigmoid(acc_ref[:, 0:C] + acc_ref[:, 3 * C:4 * C])
        R = jax.nn.sigmoid(acc_ref[:, C:2 * C] + acc_ref[:, 4 * C:5 * C])
        HR = H * R
        hr_ref[...] = HR
        z_ref[...] = Z
        # Candidate-gate skip + bias (its edge scatter term arrived in phase 0; the
        # (H*R)[src] scatter term streams in during phase 1).
        acc_ref[:, 5 * C:6 * C] += (jnp.dot(HR, wsc_ref[...], preferred_element_type=f32)
                                    + b[:, 5 * C:6 * C])

    # ------------- phase 1: scatter_dst((H*R)[src] @ Wm_hc) --------------------------------------
    @pl.when(p == 1)
    def _phase1():
        def gather(i, carry):
            s = src_ref[e0 + i]
            gh_ref[pl.ds(i, 1), :] = hr_ref[pl.ds(s, 1), :]
            return carry
        jax.lax.fori_loop(0, ET, gather, 0)

        mc = jnp.dot(gh_ref[...] * valid, wmc_ref[...], preferred_element_type=f32)     # [ET, C]
        msg_ref[:, 0:5 * C] = jnp.zeros((ET, 5 * C), f32)
        msg_ref[:, 5 * C:6 * C] = mc

        def scatter(i, carry):
            d = dst_ref[e0 + i]
            acc_ref[pl.ds(d, 1), :] += msg_ref[pl.ds(i, 1), :]
            return carry
        jax.lax.fori_loop(0, ET, scatter, 0)

    # ------------- end of phase 1: gate math + new hidden state ----------------------------------
    @pl.when((p == 1) & (e == n_et - 1))
    def _finish():
        H = h_ref[...]
        Z = z_ref[...]
        H_tilde = jnp.tanh(acc_ref[:, 2 * C:3 * C] + acc_ref[:, 5 * C:6 * C])
        out_ref[...] = Z * H + (1.0 - Z) * H_tilde


def _fuse_gates(w):
    """Stack [G, in, out] gate weights along the output (lane) dim -> [in, G*out]."""
    g, ci, co = w.shape
    return jnp.transpose(w, (1, 0, 2)).reshape(ci, g * co)


def _round_up(a, m):
    return (a + m - 1) // m * m


def _vmem_limit_bytes():
    """Generation-aware scoped-VMEM cap (≈48 MiB on v7x, ≈96 MiB on v5e/v6e)."""
    try:
        cap = int(pltpu.get_tpu_info().vmem_capacity_bytes)
    except Exception:
        return 32 * 1024 * 1024
    return min(cap * 3 // 4, 96 * 1024 * 1024)


def edgeconv_gru_pallas(X, H, edge_index, edge_feature, params):
    f32 = jnp.float32
    N, c_in = X.shape
    C = H.shape[1]
    E, De = edge_feature.shape
    (wmx_x, wme_x, wsk_x, bsk_x, wmx_h, wme_h, wsk_h, bsk_h) = params

    # ---- fuse gate weights along the output/lane dim (column layout: [x z,r,h | h z,r | h cand])
    wmsg_x3 = _fuse_gates(wmx_x)                       # [c_in, 3C]
    wmsg_hzr = _fuse_gates(wmx_h[0:2])                 # [C, 2C]
    wmsg_hc = wmx_h[2]                                 # [C, C]
    wedge6 = jnp.concatenate(
        [_fuse_gates(wme_x), _fuse_gates(wme_h[0:2]), wme_h[2]], axis=1)    # [De, 6C]
    wskip_x3 = _fuse_gates(wsk_x)                      # [c_in, 3C]
    wskip_hzr = _fuse_gates(wsk_h[0:2])                # [C, 2C]
    wskip_hc = wsk_h[2]                                # [C, C]
    bias6 = jnp.concatenate(
        [_fuse_gates(bsk_x), _fuse_gates(bsk_h[0:2]), bsk_h[2]], axis=1)    # [1, 6C]

    # ---- pad graph to tileable shapes -------------------------------------------------
    ET = 256 if E > 256 else _round_up(max(E, 8), 8)   # edge-tile size (sublane aligned)
    E_pad = _round_up(E, ET)
    n_et = E_pad // ET
    N_pad = _round_up(N, 8)

    X_p = jnp.zeros((N_pad, c_in), f32).at[:N].set(X.astype(f32))
    H_p = jnp.zeros((N_pad, C), f32).at[:N].set(H.astype(f32))
    EF_p = jnp.zeros((E_pad, De), f32).at[:E].set(edge_feature.astype(f32))
    src = jnp.zeros((E_pad,), jnp.int32).at[:E].set(edge_index[0].astype(jnp.int32))
    dst = jnp.zeros((E_pad,), jnp.int32).at[:E].set(edge_index[1].astype(jnp.int32))

    def resident(shape):
        return pl.BlockSpec(shape, lambda p, e, *prefetch: (0, 0))

    grid_spec = pltpu.PrefetchScalarGridSpec(
        num_scalar_prefetch=2,                          # src, dst -> SMEM
        grid=(2, n_et),                                 # (phase, edge-tile); phase 1 needs phase-0 result
        in_specs=[
            resident((N_pad, c_in)),                    # X   (VMEM resident)
            resident((N_pad, C)),                       # H
            pl.BlockSpec((ET, De), lambda p, e, *prefetch: (e * (1 - p), 0)),  # EF streamed (phase 0 only)
            resident((c_in, 3 * C)), resident((C, 2 * C)), resident((C, C)),   # msg weights
            resident((De, 6 * C)),                                             # fused edge weights
            resident((c_in, 3 * C)), resident((C, 2 * C)), resident((C, C)),   # skip weights
            resident((1, 6 * C)),                                              # fused biases
        ],
        out_specs=resident((N_pad, C)),
        scratch_shapes=[
            pltpu.VMEM((N_pad, 6 * C), f32),   # fused conv accumulator
            pltpu.VMEM((N_pad, C), f32),       # H * R
            pltpu.VMEM((N_pad, C), f32),       # Z
            pltpu.VMEM((ET, c_in), f32),       # gathered X[src]
            pltpu.VMEM((ET, C), f32),          # gathered H[src] / (H*R)[src]
            pltpu.VMEM((ET, 6 * C), f32),      # per-tile fused messages
        ],
    )

    out = pl.pallas_call(
        functools.partial(_gru_kernel, num_edges=E),
        out_shape=jax.ShapeDtypeStruct((N_pad, C), f32),
        grid_spec=grid_spec,
        compiler_params=pltpu.CompilerParams(
            dimension_semantics=("arbitrary", "arbitrary"),
            vmem_limit_bytes=_vmem_limit_bytes(),
        ),
    )(src, dst, X_p, H_p, EF_p,
      wmsg_x3, wmsg_hzr, wmsg_hc, wedge6, wskip_x3, wskip_hzr, wskip_hc, bias6)
    return out[:N]


def edgeconv_gru_ref(X, H, edge_index, edge_feature, params):
    """Pure-JAX reference (mirrors the PyTorch module)."""
    (wmx_x, wme_x, wsk_x, bsk_x, wmx_h, wme_h, wsk_h, bsk_h) = params
    N = X.shape[0]
    src, dst = edge_index[0], edge_index[1]

    def conv(inp, wmx, wme, wsk, bsk):
        msg = inp[src] @ wmx + edge_feature @ wme
        agg = jnp.zeros((N, wmx.shape[1]), jnp.float32).at[dst].add(msg)
        return agg + inp @ wsk + bsk[0]

    Z = jax.nn.sigmoid(conv(X, wmx_x[0], wme_x[0], wsk_x[0], bsk_x[0])
                       + conv(H, wmx_h[0], wme_h[0], wsk_h[0], bsk_h[0]))
    R = jax.nn.sigmoid(conv(X, wmx_x[1], wme_x[1], wsk_x[1], bsk_x[1])
                       + conv(H, wmx_h[1], wme_h[1], wsk_h[1], bsk_h[1]))
    Ht = jnp.tanh(conv(X, wmx_x[2], wme_x[2], wsk_x[2], bsk_x[2])
                  + conv(H * R, wmx_h[2], wme_h[2], wsk_h[2], bsk_h[2]))
    return Z * H + (1.0 - Z) * Ht


def init_params(key, c_in, c_out, edge_dim):
    """Deterministic parameter init. Stacked per gate: index 0=z, 1=r, 2=h."""
    ks = jax.random.split(key, 8)
    scale = 0.1
    wmx_x = scale * jax.random.normal(ks[0], (3, c_in, c_out), jnp.float32)
    wme_x = scale * jax.random.normal(ks[1], (3, edge_dim, c_out), jnp.float32)
    wsk_x = scale * jax.random.normal(ks[2], (3, c_in, c_out), jnp.float32)
    bsk_x = scale * jax.random.normal(ks[3], (3, 1, c_out), jnp.float32)
    wmx_h = scale * jax.random.normal(ks[4], (3, c_out, c_out), jnp.float32)
    wme_h = scale * jax.random.normal(ks[5], (3, edge_dim, c_out), jnp.float32)
    wsk_h = scale * jax.random.normal(ks[6], (3, c_out, c_out), jnp.float32)
    bsk_h = scale * jax.random.normal(ks[7], (3, 1, c_out), jnp.float32)
    return (wmx_x, wme_x, wsk_x, bsk_x, wmx_h, wme_h, wsk_h, bsk_h)


if __name__ == "__main__":
    # Small synthetic graph: N nodes, E edges.
    N, E = 16, 32
    C_IN, C_OUT, EDGE_DIM = 8, 16, 8

    key = jax.random.PRNGKey(0)
    kx, kh, ke, ks, kd, kp = jax.random.split(key, 6)

    X = jax.random.normal(kx, (N, C_IN), jnp.float32)            # batch.node_feature
    H = jax.random.normal(kh, (N, C_OUT), jnp.float32)           # batch.node_states[id]
    edge_feature = jax.random.normal(ke, (E, EDGE_DIM), jnp.float32)
    src = jax.random.randint(ks, (E,), 0, N, jnp.int32)
    dst = jax.random.randint(kd, (E,), 0, N, jnp.int32)
    edge_index = jnp.stack([src, dst], axis=0)                    # [2, E]

    params = init_params(kp, C_IN, C_OUT, EDGE_DIM)

    H_new = edgeconv_gru_pallas(X, H, edge_index, edge_feature, params)
    jax.block_until_ready(H_new)

    H_ref = edgeconv_gru_ref(X, H, edge_index, edge_feature, params)
    assert H_new.shape == (N, C_OUT) and H_new.dtype == jnp.float32
    assert jnp.allclose(H_new, H_ref, rtol=1e-4, atol=1e-4), (
        f"max abs err = {jnp.max(jnp.abs(H_new - H_ref))}")

    print("KERNEL_OK")
</pallas_src>

<mosaic_0001>
module attributes {stable_mosaic.version = 11 : i64} {
  func.func @_gru_kernel(%arg0: i32, %arg1: i32, %arg2: memref<32xi32, #tpu.memory_space<smem>>, %arg3: memref<32xi32, #tpu.memory_space<smem>>, %arg4: memref<16x8xf32, #tpu.memory_space<vmem>>, %arg5: memref<16x16xf32, #tpu.memory_space<vmem>>, %arg6: memref<32x8xf32, #tpu.memory_space<vmem>>, %arg7: memref<8x48xf32, #tpu.memory_space<vmem>>, %arg8: memref<16x32xf32, #tpu.memory_space<vmem>>, %arg9: memref<16x16xf32, #tpu.memory_space<vmem>>, %arg10: memref<8x96xf32, #tpu.memory_space<vmem>>, %arg11: memref<8x48xf32, #tpu.memory_space<vmem>>, %arg12: memref<16x32xf32, #tpu.memory_space<vmem>>, %arg13: memref<16x16xf32, #tpu.memory_space<vmem>>, %arg14: memref<1x96xf32, #tpu.memory_space<vmem>>, %arg15: memref<16x16xf32, #tpu.memory_space<vmem>>, %arg16: memref<16x96xf32, #tpu.memory_space<vmem>>, %arg17: memref<16x16xf32, #tpu.memory_space<vmem>>, %arg18: memref<16x16xf32, #tpu.memory_space<vmem>>, %arg19: memref<32x8xf32, #tpu.memory_space<vmem>>, %arg20: memref<32x16xf32, #tpu.memory_space<vmem>>, %arg21: memref<32x96xf32, #tpu.memory_space<vmem>>) attributes {dimension_semantics = [#tpu.dimension_semantics<arbitrary>, #tpu.dimension_semantics<arbitrary>], iteration_bounds = array<i64: 2, 1>, scalar_prefetch = 2 : i64, scratch_operands = 6 : i64, tpu.core_type = #tpu.core_type<tc>, window_params = [{pipeline_mode = #tpu.pipeline_mode<synchronous>, transform_indices = @transform_0, window_bounds = array<i64: 16, 8>}, {pipeline_mode = #tpu.pipeline_mode<synchronous>, transform_indices = @transform_1, window_bounds = array<i64: 16, 16>}, {transform_indices = @transform_2, window_bounds = array<i64: 32, 8>}, {pipeline_mode = #tpu.pipeline_mode<synchronous>, transform_indices = @transform_3, window_bounds = array<i64: 8, 48>}, {pipeline_mode = #tpu.pipeline_mode<synchronous>, transform_indices = @transform_4, window_bounds = array<i64: 16, 32>}, {pipeline_mode = #tpu.pipeline_mode<synchronous>, transform_indices = @transform_5, window_bounds = array<i64: 16, 16>}, {pipeline_mode = #tpu.pipeline_mode<synchronous>, transform_indices = @transform_6, window_bounds = array<i64: 8, 96>}, {pipeline_mode = #tpu.pipeline_mode<synchronous>, transform_indices = @transform_7, window_bounds = array<i64: 8, 48>}, {pipeline_mode = #tpu.pipeline_mode<synchronous>, transform_indices = @transform_8, window_bounds = array<i64: 16, 32>}, {pipeline_mode = #tpu.pipeline_mode<synchronous>, transform_indices = @transform_9, window_bounds = array<i64: 16, 16>}, {pipeline_mode = #tpu.pipeline_mode<synchronous>, transform_indices = @transform_10, window_bounds = array<i64: 1, 96>}, {pipeline_mode = #tpu.pipeline_mode<synchronous>, transform_indices = @transform_11, window_bounds = array<i64: 16, 16>}]} {
    %c32_i32 = arith.constant 32 : i32
    %0 = arith.muli %arg1, %c32_i32 : i32
    %1 = tpu.iota {dimensions = array<i32: 0>} : vector<32x1xi32>
    %2 = vector.broadcast %0 : i32 to vector<32x1xi32>
    %3 = arith.addi %1, %2 : vector<32x1xi32>
    %c32_i32_0 = arith.constant 32 : i32
    %4 = vector.broadcast %c32_i32_0 : i32 to vector<32x1xi32>
    %5 = arith.cmpi slt, %3, %4 : vector<32x1xi32>
    %6 = arith.extui %5 : vector<32x1xi1> to vector<32x1xi32>
    %7 = arith.sitofp %6 : vector<32x1xi32> to vector<32x1xf32>
    %c0_i32 = arith.constant 0 : i32
    %8 = arith.cmpi eq, %arg0, %c0_i32 : i32
    %c0_i32_1 = arith.constant 0 : i32
    %9 = arith.cmpi eq, %arg1, %c0_i32_1 : i32
    %10 = arith.andi %8, %9 : i1
    %11 = arith.extui %10 : i1 to i32
    %c0_i32_2 = arith.constant 0 : i32
    %12 = arith.cmpi ne, %11, %c0_i32_2 : i32
    scf.if %12 {
      %cst = arith.constant 0.000000e+00 : f32
      %29 = vector.broadcast %cst : f32 to vector<16x96xf32>
      %c0 = arith.constant 0 : index
      %c0_12 = arith.constant 0 : index
      %30 = vector.load %arg16[%c0, %c0_12] : memref<16x96xf32, #tpu.memory_space<vmem>>, vector<16x96xf32>
      tpu.vector_store %arg16[%c0, %c0_12], %29 {strides = array<i32>} : memref<16x96xf32, #tpu.memory_space<vmem>>, vector<16x96xf32>,
    } else {
    }
    %c0_i32_3 = arith.constant 0 : i32
    %13 = arith.cmpi eq, %arg0, %c0_i32_3 : i32
    %14 = arith.extui %13 : i1 to i32
    %c0_i32_4 = arith.constant 0 : i32
    %15 = arith.cmpi ne, %14, %c0_i32_4 : i32
    scf.if %15 {
      %c0_i32_12 = arith.constant 0 : i32
      %c32_i32_13 = arith.constant 32 : i32
      %29 = arith.addi %c0_i32_12, %c32_i32_13 : i32
      %c1_i32_14 = arith.constant 1 : i32
      scf.for %arg22 = %c0_i32_12 to %29 step %c1_i32_14  : i32 {
        %53 = arith.addi %0, %arg22 : i32
        %54 = arith.index_cast %53 : i32 to index
        %55 = memref.load %arg2[%54] : memref<32xi32, #tpu.memory_space<smem>>
        %56 = arith.index_cast %55 : i32 to index
        %c0_42 = arith.constant 0 : index
        %57 = vector.load %arg4[%56, %c0_42] : memref<16x8xf32, #tpu.memory_space<vmem>>, vector<1x8xf32>
        %58 = arith.index_cast %arg22 : i32 to index
        %c0_43 = arith.constant 0 : index
        %59 = vector.load %arg19[%58, %c0_43] : memref<32x8xf32, #tpu.memory_space<vmem>>, vector<1x8xf32>
        tpu.vector_store %arg19[%58, %c0_43], %57 {strides = array<i32>} : memref<32x8xf32, #tpu.memory_space<vmem>>, vector<1x8xf32>,
        %60 = arith.index_cast %55 : i32 to index
        %c0_44 = arith.constant 0 : index
        %61 = vector.load %arg5[%60, %c0_44] : memref<16x16xf32, #tpu.memory_space<vmem>>, vector<1x16xf32>
        %62 = arith.index_cast %arg22 : i32 to index
        %c0_45 = arith.constant 0 : index
        %63 = vector.load %arg20[%62, %c0_45] : memref<32x16xf32, #tpu.memory_space<vmem>>, vector<1x16xf32>
        tpu.vector_store %arg20[%62, %c0_45], %61 {strides = array<i32>} : memref<32x16xf32, #tpu.memory_space<vmem>>, vector<1x16xf32>,
      }
      %c32_i32_15 = arith.constant 32 : i32
      %c0 = arith.constant 0 : index
      %c0_16 = arith.constant 0 : index
      %30 = vector.load %arg19[%c0, %c0_16] : memref<32x8xf32, #tpu.memory_space<vmem>>, vector<32x8xf32>
      %31 = vector.broadcast %7 : vector<32x1xf32> to vector<32x8xf32>
      %32 = arith.mulf %30, %31 : vector<32x8xf32>
      %c0_17 = arith.constant 0 : index
      %c0_18 = arith.constant 0 : index
      %33 = vector.load %arg7[%c0_17, %c0_18] : memref<8x48xf32, #tpu.memory_space<vmem>>, vector<8x48xf32>
      %cst = arith.constant dense<0.000000e+00> : vector<32x48xf32>
      %34 = tpu.matmul %32, %33, %cst {dimension_numbers = #tpu.dot_dimension_numbers<[1], [0], [0], [1], [0, 0, 1, 1], [], []>} : vector<32x8xf32>, vector<8x48xf32>, vector<32x48xf32> -> vector<32x48xf32>
      %c0_19 = arith.constant 0 : index
      %c0_20 = arith.constant 0 : index
      %35 = vector.load %arg20[%c0_19, %c0_20] : memref<32x16xf32, #tpu.memory_space<vmem>>, vector<32x16xf32>
      %36 = vector.broadcast %7 : vector<32x1xf32> to vector<32x16xf32>
      %37 = arith.mulf %35, %36 : vector<32x16xf32>
      %c0_21 = arith.constant 0 : index
      %c0_22 = arith.constant 0 : index
      %38 = vector.load %arg8[%c0_21, %c0_22] : memref<16x32xf32, #tpu.memory_space<vmem>>, vector<16x32xf32>
      %cst_23 = arith.constant dense<0.000000e+00> : vector<32x32xf32>
      %39 = tpu.matmul %37, %38, %cst_23 {dimension_numbers = #tpu.dot_dimension_numbers<[1], [0], [0], [1], [0, 0, 1, 1], [], []>} : vector<32x16xf32>, vector<16x32xf32>, vector<32x32xf32> -> vector<32x32xf32>
      %c0_24 = arith.constant 0 : index
      %c0_25 = arith.constant 0 : index
      %40 = vector.load %arg6[%c0_24, %c0_25] : memref<32x8xf32, #tpu.memory_space<vmem>>, vector<32x8xf32>
      %41 = vector.broadcast %7 : vector<32x1xf32> to vector<32x8xf32>
      %42 = arith.mulf %40, %41 : vector<32x8xf32>
      %c0_26 = arith.constant 0 : index
      %c0_27 = arith.constant 0 : index
      %43 = vector.load %arg10[%c0_26, %c0_27] : memref<8x96xf32, #tpu.memory_space<vmem>>, vector<8x96xf32>
      %cst_28 = arith.constant dense<0.000000e+00> : vector<32x96xf32>
      %44 = tpu.matmul %42, %43, %cst_28 {dimension_numbers = #tpu.dot_dimension_numbers<[1], [0], [0], [1], [0, 0, 1, 1], [], []>} : vector<32x8xf32>, vector<8x96xf32>, vector<32x96xf32> -> vector<32x96xf32>
      %c0_29 = arith.constant 0 : index
      %c0_30 = arith.constant 0 : index
      %45 = vector.load %arg21[%c0_29, %c0_30] : memref<32x96xf32, #tpu.memory_space<vmem>>, vector<32x96xf32>
      tpu.vector_store %arg21[%c0_29, %c0_30], %44 {strides = array<i32>} : memref<32x96xf32, #tpu.memory_space<vmem>>, vector<32x96xf32>,
      %c0_31 = arith.constant 0 : index
      %c0_32 = arith.constant 0 : index
      %46 = vector.load %arg21[%c0_31, %c0_32] : memref<32x96xf32, #tpu.memory_space<vmem>>, vector<32x48xf32>
      %47 = arith.addf %46, %34 : vector<32x48xf32>
      %c0_33 = arith.constant 0 : index
      %c0_34 = arith.constant 0 : index
      %48 = vector.load %arg21[%c0_33, %c0_34] : memref<32x96xf32, #tpu.memory_space<vmem>>, vector<32x48xf32>
      tpu.vector_store %arg21[%c0_33, %c0_34], %47 {strides = array<i32>} : memref<32x96xf32, #tpu.memory_space<vmem>>, vector<32x48xf32>,
      %c0_35 = arith.constant 0 : index
      %c48 = arith.constant 48 : index
      %49 = vector.load %arg21[%c0_35, %c48] : memref<32x96xf32, #tpu.memory_space<vmem>>, vector<32x32xf32>
      %50 = arith.addf %49, %39 : vector<32x32xf32>
      %c0_36 = arith.constant 0 : index
      %c48_37 = arith.constant 48 : index
      %51 = vector.load %arg21[%c0_36, %c48_37] : memref<32x96xf32, #tpu.memory_space<vmem>>, vector<32x32xf32>
      tpu.vector_store %arg21[%c0_36, %c48_37], %50 {strides = array<i32>} : memref<32x96xf32, #tpu.memory_space<vmem>>, vector<32x32xf32>,
      %c0_i32_38 = arith.constant 0 : i32
      %c32_i32_39 = arith.constant 32 : i32
      %52 = arith.addi %c0_i32_38, %c32_i32_39 : i32
      %c1_i32_40 = arith.constant 1 : i32
      scf.for %arg22 = %c0_i32_38 to %52 step %c1_i32_40  : i32 {
        %53 = arith.addi %0, %arg22 : i32
        %54 = arith.index_cast %53 : i32 to index
        %55 = memref.load %arg3[%54] : memref<32xi32, #tpu.memory_space<smem>>
        %56 = arith.index_cast %55 : i32 to index
        %c0_42 = arith.constant 0 : index
        %57 = vector.load %arg16[%56, %c0_42] : memref<16x96xf32, #tpu.memory_space<vmem>>, vector<1x96xf32>
        %58 = arith.index_cast %arg22 : i32 to index
        %c0_43 = arith.constant 0 : index
        %59 = vector.load %arg21[%58, %c0_43] : memref<32x96xf32, #tpu.memory_space<vmem>>, vector<1x96xf32>
        %60 = arith.addf %57, %59 : vector<1x96xf32>
        %61 = arith.index_cast %55 : i32 to index
        %c0_44 = arith.constant 0 : index
        %62 = vector.load %arg16[%61, %c0_44] : memref<16x96xf32, #tpu.memory_space<vmem>>, vector<1x96xf32>
        tpu.vector_store %arg16[%61, %c0_44], %60 {strides = array<i32>} : memref<16x96xf32, #tpu.memory_space<vmem>>, vector<1x96xf32>,
      }
      %c32_i32_41 = arith.constant 32 : i32
    } else {
    }
    %c0_i32_5 = arith.constant 0 : i32
    %16 = arith.cmpi eq, %arg0, %c0_i32_5 : i32
    %c0_i32_6 = arith.constant 0 : i32
    %17 = arith.cmpi eq, %arg1, %c0_i32_6 : i32
    %18 = arith.andi %16, %17 : i1
    %19 = arith.extui %18 : i1 to i32
    %c0_i32_7 = arith.constant 0 : i32
    %20 = arith.cmpi ne, %19, %c0_i32_7 : i32
    scf.if %20 {
      %c0 = arith.constant 0 : index
      %c0_12 = arith.constant 0 : index
      %29 = vector.load %arg4[%c0, %c0_12] : memref<16x8xf32, #tpu.memory_space<vmem>>, vector<16x8xf32>
      %c0_13 = arith.constant 0 : index
      %c0_14 = arith.constant 0 : index
      %30 = vector.load %arg5[%c0_13, %c0_14] : memref<16x16xf32, #tpu.memory_space<vmem>>, vector<16x16xf32>
      %c0_15 = arith.constant 0 : index
      %c0_16 = arith.constant 0 : index
      %31 = vector.load %arg14[%c0_15, %c0_16] : memref<1x96xf32, #tpu.memory_space<vmem>>, vector<1x96xf32>
      %c0_17 = arith.constant 0 : index
      %c0_18 = arith.constant 0 : index
      %32 = vector.load %arg16[%c0_17, %c0_18] : memref<16x96xf32, #tpu.memory_space<vmem>>, vector<16x48xf32>
      %c0_19 = arith.constant 0 : index
      %c0_20 = arith.constant 0 : index
      %33 = vector.load %arg11[%c0_19, %c0_20] : memref<8x48xf32, #tpu.memory_space<vmem>>, vector<8x48xf32>
      %cst = arith.constant dense<0.000000e+00> : vector<16x48xf32>
      %34 = tpu.matmul %29, %33, %cst {dimension_numbers = #tpu.dot_dimension_numbers<[1], [0], [0], [1], [0, 0, 1, 1], [], []>} : vector<16x8xf32>, vector<8x48xf32>, vector<16x48xf32> -> vector<16x48xf32>
      %35 = vector.extract_strided_slice %31 {offsets = [0, 0], sizes = [1, 48], strides = [1, 1]} : vector<1x96xf32> to vector<1x48xf32>
      %36 = vector.broadcast %35 : vector<1x48xf32> to vector<16x48xf32>
      %37 = arith.addf %34, %36 : vector<16x48xf32>
      %38 = arith.addf %32, %37 : vector<16x48xf32>
      %c0_21 = arith.constant 0 : index
      %c0_22 = arith.constant 0 : index
      %39 = vector.load %arg16[%c0_21, %c0_22] : memref<16x96xf32, #tpu.memory_space<vmem>>, vector<16x48xf32>
      tpu.vector_store %arg16[%c0_21, %c0_22], %38 {strides = array<i32>} : memref<16x96xf32, #tpu.memory_space<vmem>>, vector<16x48xf32>,
      %c0_23 = arith.constant 0 : index
      %c48 = arith.constant 48 : index
      %40 = vector.load %arg16[%c0_23, %c48] : memref<16x96xf32, #tpu.memory_space<vmem>>, vector<16x32xf32>
      %c0_24 = arith.constant 0 : index
      %c0_25 = arith.constant 0 : index
      %41 = vector.load %arg12[%c0_24, %c0_25] : memref<16x32xf32, #tpu.memory_space<vmem>>, vector<16x32xf32>
      %cst_26 = arith.constant dense<0.000000e+00> : vector<16x32xf32>
      %42 = tpu.matmul %30, %41, %cst_26 {dimension_numbers = #tpu.dot_dimension_numbers<[1], [0], [0], [1], [0, 0, 1, 1], [], []>} : vector<16x16xf32>, vector<16x32xf32>, vector<16x32xf32> -> vector<16x32xf32>
      %43 = vector.extract_strided_slice %31 {offsets = [0, 48], sizes = [1, 32], strides = [1, 1]} : vector<1x96xf32> to vector<1x32xf32>
      %44 = vector.broadcast %43 : vector<1x32xf32> to vector<16x32xf32>
      %45 = arith.addf %42, %44 : vector<16x32xf32>
      %46 = arith.addf %40, %45 : vector<16x32xf32>
      %c0_27 = arith.constant 0 : index
      %c48_28 = arith.constant 48 : index
      %47 = vector.load %arg16[%c0_27, %c48_28] : memref<16x96xf32, #tpu.memory_space<vmem>>, vector<16x32xf32>
      tpu.vector_store %arg16[%c0_27, %c48_28], %46 {strides = array<i32>} : memref<16x96xf32, #tpu.memory_space<vmem>>, vector<16x32xf32>,
      %c0_29 = arith.constant 0 : index
      %c0_30 = arith.constant 0 : index
      %48 = vector.load %arg16[%c0_29, %c0_30] : memref<16x96xf32, #tpu.memory_space<vmem>>, vector<16x16xf32>
      %c0_31 = arith.constant 0 : index
      %c48_32 = arith.constant 48 : index
      %49 = vector.load %arg16[%c0_31, %c48_32] : memref<16x96xf32, #tpu.memory_space<vmem>>, vector<16x16xf32>
      %50 = arith.addf %48, %49 : vector<16x16xf32>
      %51 = arith.negf %50 : vector<16x16xf32>
      %52 = math.exp %51 : vector<16x16xf32>
      %cst_33 = arith.constant 1.000000e+00 : f32
      %53 = vector.broadcast %cst_33 : f32 to vector<16x16xf32>
      %54 = arith.addf %53, %52 : vector<16x16xf32>
      %55 = arith.divf %53, %54 : vector<16x16xf32>
      %c0_34 = arith.constant 0 : index
      %c16 = arith.constant 16 : index
      %56 = vector.load %arg16[%c0_34, %c16] : memref<16x96xf32, #tpu.memory_space<vmem>>, vector<16x16xf32>
      %c0_35 = arith.constant 0 : index
      %c64 = arith.constant 64 : index
      %57 = vector.load %arg16[%c0_35, %c64] : memref<16x96xf32, #tpu.memory_space<vmem>>, vector<16x16xf32>
      %58 = arith.addf %56, %57 : vector<16x16xf32>
      %59 = arith.negf %58 : vector<16x16xf32>
      %60 = math.exp %59 : vector<16x16xf32>
      %cst_36 = arith.constant 1.000000e+00 : f32
      %61 = vector.broadcast %cst_36 : f32 to vector<16x16xf32>
      %62 = arith.addf %61, %60 : vector<16x16xf32>
      %63 = arith.divf %61, %62 : vector<16x16xf32>
      %64 = arith.mulf %30, %63 : vector<16x16xf32>
      %c0_37 = arith.constant 0 : index
      %c0_38 = arith.constant 0 : index
      %65 = vector.load %arg17[%c0_37, %c0_38] : memref<16x16xf32, #tpu.memory_space<vmem>>, vector<16x16xf32>
      tpu.vector_store %arg17[%c0_37, %c0_38], %64 {strides = array<i32>} : memref<16x16xf32, #tpu.memory_space<vmem>>, vector<16x16xf32>,
      %c0_39 = arith.constant 0 : index
      %c0_40 = arith.constant 0 : index
      %66 = vector.load %arg18[%c0_39, %c0_40] : memref<16x16xf32, #tpu.memory_space<vmem>>, vector<16x16xf32>
      tpu.vector_store %arg18[%c0_39, %c0_40], %55 {strides = array<i32>} : memref<16x16xf32, #tpu.memory_space<vmem>>, vector<16x16xf32>,
      %c0_41 = arith.constant 0 : index
      %c80 = arith.constant 80 : index
      %67 = vector.load %arg16[%c0_41, %c80] : memref<16x96xf32, #tpu.memory_space<vmem>>, vector<16x16xf32>
      %c0_42 = arith.constant 0 : index
      %c0_43 = arith.constant 0 : index
      %68 = vector.load %arg13[%c0_42, %c0_43] : memref<16x16xf32, #tpu.memory_space<vmem>>, vector<16x16xf32>
      %cst_44 = arith.constant dense<0.000000e+00> : vector<16x16xf32>
      %69 = tpu.matmul %64, %68, %cst_44 {dimension_numbers = #tpu.dot_dimension_numbers<[1], [0], [0], [1], [0, 0, 1, 1], [], []>} : vector<16x16xf32>, vector<16x16xf32>, vector<16x16xf32> -> vector<16x16xf32>
      %70 = vector.extract_strided_slice %31 {offsets = [0, 80], sizes = [1, 16], strides = [1, 1]} : vector<1x96xf32> to vector<1x16xf32>
      %71 = vector.broadcast %70 : vector<1x16xf32> to vector<16x16xf32>
      %72 = arith.addf %69, %71 : vector<16x16xf32>
      %73 = arith.addf %67, %72 : vector<16x16xf32>
      %c0_45 = arith.constant 0 : index
      %c80_46 = arith.constant 80 : index
      %74 = vector.load %arg16[%c0_45, %c80_46] : memref<16x96xf32, #tpu.memory_space<vmem>>, vector<16x16xf32>
      tpu.vector_store %arg16[%c0_45, %c80_46], %73 {strides = array<i32>} : memref<16x96xf32, #tpu.memory_space<vmem>>, vector<16x16xf32>,
    } else {
    }
    %c1_i32 = arith.constant 1 : i32
    %21 = arith.cmpi eq, %arg0, %c1_i32 : i32
    %22 = arith.extui %21 : i1 to i32
    %c0_i32_8 = arith.constant 0 : i32
    %23 = arith.cmpi ne, %22, %c0_i32_8 : i32
    scf.if %23 {
      %c0_i32_12 = arith.constant 0 : i32
      %c32_i32_13 = arith.constant 32 : i32
      %29 = arith.addi %c0_i32_12, %c32_i32_13 : i32
      %c1_i32_14 = arith.constant 1 : i32
      scf.for %arg22 = %c0_i32_12 to %29 step %c1_i32_14  : i32 {
        %39 = arith.addi %0, %arg22 : i32
        %40 = arith.index_cast %39 : i32 to index
        %41 = memref.load %arg2[%40] : memref<32xi32, #tpu.memory_space<smem>>
        %42 = arith.index_cast %41 : i32 to index
        %c0_27 = arith.constant 0 : index
        %43 = vector.load %arg17[%42, %c0_27] : memref<16x16xf32, #tpu.memory_space<vmem>>, vector<1x16xf32>
        %44 = arith.index_cast %arg22 : i32 to index
        %c0_28 = arith.constant 0 : index
        %45 = vector.load %arg20[%44, %c0_28] : memref<32x16xf32, #tpu.memory_space<vmem>>, vector<1x16xf32>
        tpu.vector_store %arg20[%44, %c0_28], %43 {strides = array<i32>} : memref<32x16xf32, #tpu.memory_space<vmem>>, vector<1x16xf32>,
      }
      %c32_i32_15 = arith.constant 32 : i32
      %c0 = arith.constant 0 : index
      %c0_16 = arith.constant 0 : index
      %30 = vector.load %arg20[%c0, %c0_16] : memref<32x16xf32, #tpu.memory_space<vmem>>, vector<32x16xf32>
      %31 = vector.broadcast %7 : vector<32x1xf32> to vector<32x16xf32>
      %32 = arith.mulf %30, %31 : vector<32x16xf32>
      %c0_17 = arith.constant 0 : index
      %c0_18 = arith.constant 0 : index
      %33 = vector.load %arg9[%c0_17, %c0_18] : memref<16x16xf32, #tpu.memory_space<vmem>>, vector<16x16xf32>
      %cst = arith.constant dense<0.000000e+00> : vector<32x16xf32>
      %34 = tpu.matmul %32, %33, %cst {dimension_numbers = #tpu.dot_dimension_numbers<[1], [0], [0], [1], [0, 0, 1, 1], [], []>} : vector<32x16xf32>, vector<16x16xf32>, vector<32x16xf32> -> vector<32x16xf32>
      %cst_19 = arith.constant 0.000000e+00 : f32
      %35 = vector.broadcast %cst_19 : f32 to vector<32x80xf32>
      %c0_20 = arith.constant 0 : index
      %c0_21 = arith.constant 0 : index
      %36 = vector.load %arg21[%c0_20, %c0_21] : memref<32x96xf32, #tpu.memory_space<vmem>>, vector<32x80xf32>
      tpu.vector_store %arg21[%c0_20, %c0_21], %35 {strides = array<i32>} : memref<32x96xf32, #tpu.memory_space<vmem>>, vector<32x80xf32>,
      %c0_22 = arith.constant 0 : index
      %c80 = arith.constant 80 : index
      %37 = vector.load %arg21[%c0_22, %c80] : memref<32x96xf32, #tpu.memory_space<vmem>>, vector<32x16xf32>
      tpu.vector_store %arg21[%c0_22, %c80], %34 {strides = array<i32>} : memref<32x96xf32, #tpu.memory_space<vmem>>, vector<32x16xf32>,
      %c0_i32_23 = arith.constant 0 : i32
      %c32_i32_24 = arith.constant 32 : i32
      %38 = arith.addi %c0_i32_23, %c32_i32_24 : i32
      %c1_i32_25 = arith.constant 1 : i32
      scf.for %arg22 = %c0_i32_23 to %38 step %c1_i32_25  : i32 {
        %39 = arith.addi %0, %arg22 : i32
        %40 = arith.index_cast %39 : i32 to index
        %41 = memref.load %arg3[%40] : memref<32xi32, #tpu.memory_space<smem>>
        %42 = arith.index_cast %41 : i32 to index
        %c0_27 = arith.constant 0 : index
        %43 = vector.load %arg16[%42, %c0_27] : memref<16x96xf32, #tpu.memory_space<vmem>>, vector<1x96xf32>
        %44 = arith.index_cast %arg22 : i32 to index
        %c0_28 = arith.constant 0 : index
        %45 = vector.load %arg21[%44, %c0_28] : memref<32x96xf32, #tpu.memory_space<vmem>>, vector<1x96xf32>
        %46 = arith.addf %43, %45 : vector<1x96xf32>
        %47 = arith.index_cast %41 : i32 to index
        %c0_29 = arith.constant 0 : index
        %48 = vector.load %arg16[%47, %c0_29] : memref<16x96xf32, #tpu.memory_space<vmem>>, vector<1x96xf32>
        tpu.vector_store %arg16[%47, %c0_29], %46 {strides = array<i32>} : memref<16x96xf32, #tpu.memory_space<vmem>>, vector<1x96xf32>,
      }
      %c32_i32_26 = arith.constant 32 : i32
    } else {
    }
    %c1_i32_9 = arith.constant 1 : i32
    %24 = arith.cmpi eq, %arg0, %c1_i32_9 : i32
    %c0_i32_10 = arith.constant 0 : i32
    %25 = arith.cmpi eq, %arg1, %c0_i32_10 : i32
    %26 = arith.andi %24, %25 : i1
    %27 = arith.extui %26 : i1 to i32
    %c0_i32_11 = arith.constant 0 : i32
    %28 = arith.cmpi ne, %27, %c0_i32_11 : i32
    scf.if %28 {
      %c0 = arith.constant 0 : index
      %c0_12 = arith.constant 0 : index
      %29 = vector.load %arg5[%c0, %c0_12] : memref<16x16xf32, #tpu.memory_space<vmem>>, vector<16x16xf32>
      %c0_13 = arith.constant 0 : index
      %c0_14 = arith.constant 0 : index
      %30 = vector.load %arg18[%c0_13, %c0_14] : memref<16x16xf32, #tpu.memory_space<vmem>>, vector<16x16xf32>
      %c0_15 = arith.constant 0 : index
      %c32 = arith.constant 32 : index
      %31 = vector.load %arg16[%c0_15, %c32] : memref<16x96xf32, #tpu.memory_space<vmem>>, vector<16x16xf32>
      %c0_16 = arith.constant 0 : index
      %c80 = arith.constant 80 : index
      %32 = vector.load %arg16[%c0_16, %c80] : memref<16x96xf32, #tpu.memory_space<vmem>>, vector<16x16xf32>
      %33 = arith.addf %31, %32 : vector<16x16xf32>
      %34 = math.tanh %33 : vector<16x16xf32>
      %35 = arith.mulf %30, %29 : vector<16x16xf32>
      %cst = arith.constant 1.000000e+00 : f32
      %36 = vector.broadcast %cst : f32 to vector<16x16xf32>
      %37 = arith.subf %36, %30 : vector<16x16xf32>
      %38 = arith.mulf %37, %34 : vector<16x16xf32>
      %39 = arith.addf %35, %38 : vector<16x16xf32>
      %c0_17 = arith.constant 0 : index
      %c0_18 = arith.constant 0 : index
      %40 = vector.load %arg15[%c0_17, %c0_18] : memref<16x16xf32, #tpu.memory_space<vmem>>, vector<16x16xf32>
      tpu.vector_store %arg15[%c0_17, %c0_18], %39 {strides = array<i32>} : memref<16x16xf32, #tpu.memory_space<vmem>>, vector<16x16xf32>,
    } else {
    }
    return
  }
  func.func @transform_0(%arg0: i32, %arg1: i32, %arg2: memref<32xi32, #tpu.memory_space<smem>>, %arg3: memref<32xi32, #tpu.memory_space<smem>>) -> (i32, i32) {
    %c0_i32 = arith.constant 0 : i32
    %c0_i32_0 = arith.constant 0 : i32
    %c0_i32_1 = arith.constant 0 : i32
    return %c0_i32, %c0_i32_0 : i32, i32
  }
  func.func @transform_1(%arg0: i32, %arg1: i32, %arg2: memref<32xi32, #tpu.memory_space<smem>>, %arg3: memref<32xi32, #tpu.memory_space<smem>>) -> (i32, i32) {
    %c0_i32 = arith.constant 0 : i32
    %c0_i32_0 = arith.constant 0 : i32
    %c0_i32_1 = arith.constant 0 : i32
    return %c0_i32, %c0_i32_0 : i32, i32
  }
  func.func @transform_2(%arg0: i32, %arg1: i32, %arg2: memref<32xi32, #tpu.memory_space<smem>>, %arg3: memref<32xi32, #tpu.memory_space<smem>>) -> (i32, i32) {
    %c1_i32 = arith.constant 1 : i32
    %0 = arith.subi %c1_i32, %arg0 : i32
    %1 = arith.muli %arg1, %0 : i32
    %c0_i32 = arith.constant 0 : i32
    %c0_i32_0 = arith.constant 0 : i32
    return %1, %c0_i32 : i32, i32
  }
  func.func @transform_3(%arg0: i32, %arg1: i32, %arg2: memref<32xi32, #tpu.memory_space<smem>>, %arg3: memref<32xi32, #tpu.memory_space<smem>>) -> (i32, i32) {
    %c0_i32 = arith.constant 0 : i32
    %c0_i32_0 = arith.constant 0 : i32
    %c0_i32_1 = arith.constant 0 : i32
    return %c0_i32, %c0_i32_0 : i32, i32
  }
  func.func @transform_4(%arg0: i32, %arg1: i32, %arg2: memref<32xi32, #tpu.memory_space<smem>>, %arg3: memref<32xi32, #tpu.memory_space<smem>>) -> (i32, i32) {
    %c0_i32 = arith.constant 0 : i32
    %c0_i32_0 = arith.constant 0 : i32
    %c0_i32_1 = arith.constant 0 : i32
    return %c0_i32, %c0_i32_0 : i32, i32
  }
  func.func @transform_5(%arg0: i32, %arg1: i32, %arg2: memref<32xi32, #tpu.memory_space<smem>>, %arg3: memref<32xi32, #tpu.memory_space<smem>>) -> (i32, i32) {
    %c0_i32 = arith.constant 0 : i32
    %c0_i32_0 = arith.constant 0 : i32
    %c0_i32_1 = arith.constant 0 : i32
    return %c0_i32, %c0_i32_0 : i32, i32
  }
  func.func @transform_6(%arg0: i32, %arg1: i32, %arg2: memref<32xi32, #tpu.memory_space<smem>>, %arg3: memref<32xi32, #tpu.memory_space<smem>>) -> (i32, i32) {
    %c0_i32 = arith.constant 0 : i32
    %c0_i32_0 = arith.constant 0 : i32
    %c0_i32_1 = arith.constant 0 : i32
    return %c0_i32, %c0_i32_0 : i32, i32
  }
  func.func @transform_7(%arg0: i32, %arg1: i32, %arg2: memref<32xi32, #tpu.memory_space<smem>>, %arg3: memref<32xi32, #tpu.memory_space<smem>>) -> (i32, i32) {
    %c0_i32 = arith.constant 0 : i32
    %c0_i32_0 = arith.constant 0 : i32
    %c0_i32_1 = arith.constant 0 : i32
    return %c0_i32, %c0_i32_0 : i32, i32
  }
  func.func @transform_8(%arg0: i32, %arg1: i32, %arg2: memref<32xi32, #tpu.memory_space<smem>>, %arg3: memref<32xi32, #tpu.memory_space<smem>>) -> (i32, i32) {
    %c0_i32 = arith.constant 0 : i32
    %c0_i32_0 = arith.constant 0 : i32
    %c0_i32_1 = arith.constant 0 : i32
    return %c0_i32, %c0_i32_0 : i32, i32
  }
  func.func @transform_9(%arg0: i32, %arg1: i32, %arg2: memref<32xi32, #tpu.memory_space<smem>>, %arg3: memref<32xi32, #tpu.memory_space<smem>>) -> (i32, i32) {
    %c0_i32 = arith.constant 0 : i32
    %c0_i32_0 = arith.constant 0 : i32
    %c0_i32_1 = arith.constant 0 : i32
    return %c0_i32, %c0_i32_0 : i32, i32
  }
  func.func @transform_10(%arg0: i32, %arg1: i32, %arg2: memref<32xi32, #tpu.memory_space<smem>>, %arg3: memref<32xi32, #tpu.memory_space<smem>>) -> (i32, i32) {
    %c0_i32 = arith.constant 0 : i32
    %c0_i32_0 = arith.constant 0 : i32
    %c0_i32_1 = arith.constant 0 : i32
    return %c0_i32, %c0_i32_0 : i32, i32
  }
  func.func @transform_11(%arg0: i32, %arg1: i32, %arg2: memref<32xi32, #tpu.memory_space<smem>>, %arg3: memref<32xi32, #tpu.memory_space<smem>>) -> (i32, i32) {
    %c0_i32 = arith.constant 0 : i32
    %c0_i32_0 = arith.constant 0 : i32
    %c0_i32_1 = arith.constant 0 : i32
    return %c0_i32, %c0_i32_0 : i32, i32
  }
}

</mosaic_0001>

<llo_original>
// kernel: tpu_custom_call.1
$region0: #{tpu_custom_call.1}
  #allocation0 [shape = 'u32[]', space=smem, size = 0x4, offset = 0x4, fixed_abs, tag = 'smem constant byte address 0x4 - core index']
  #allocation1 [shape = 'u32[144,128]{1,0:T(1,128)}', space=vmem, size = 0x12000, scoped, tag = 'internal scratch']
  #allocation2 [shape = 'f32[16,96]{1,0:T(8,128)}', space=vmem, size = 0x2000, scoped, tag = 'scratch operand']
  #allocation3 [shape = 'f32[16,16]{1,0:T(8,128)}', space=vmem, size = 0x2000, scoped, tag = 'scratch operand']
  #allocation4 [shape = 'f32[16,16]{1,0:T(8,128)}', space=vmem, size = 0x2000, scoped, tag = 'scratch operand']
  #allocation5 [shape = 'f32[32,8]{1,0:T(8,128)}', space=vmem, size = 0x4000, scoped, tag = 'scratch operand']
  #allocation6 [shape = 'f32[32,16]{1,0:T(8,128)}', space=vmem, size = 0x4000, scoped, tag = 'scratch operand']
  #allocation7 [shape = 'f32[32,96]{1,0:T(8,128)}', space=vmem, size = 0x4000, scoped, tag = 'scratch operand']
  #allocation8 [shape = 's32[1]{0}', space=sflag, size = 0x4, scoped, tag = 'scoped memory for tpu_custom_call.1']
  #allocation9 [shape = 'u8[512]{0}', space=smem, size = 0x200, scoped, tag = 'prefetched SMEM operand 0']
  #allocation10 [shape = 'u8[512]{0}', space=smem, size = 0x200, scoped, tag = 'prefetched SMEM operand 1']
  %s0 = inlined_call_operand.hbm [shape: s32[32], index: 0, kind: input, shape index: {}]
  %s1 = inlined_call_operand.vmem [shape: s32[32], index: 1, kind: input, shape index: {}]
  %s2 = inlined_call_operand.vmem [shape: f32[16,8], index: 2, kind: input, shape index: {}]
  %s3 = inlined_call_operand.vmem [shape: f32[16,16], index: 3, kind: input, shape index: {}]
  %s4 = inlined_call_operand.vmem [shape: f32[32,8], index: 4, kind: input, shape index: {}]
  %s5 = inlined_call_operand.hbm [shape: f32[8,48], index: 5, kind: input, shape index: {}]
  %s6 = inlined_call_operand.vmem [shape: f32[16,32], index: 6, kind: input, shape index: {}]
  %s7 = inlined_call_operand.vmem [shape: f32[16,16], index: 7, kind: input, shape index: {}]
  %s8 = inlined_call_operand.vmem [shape: f32[8,96], index: 8, kind: input, shape index: {}]
  %s9 = inlined_call_operand.vmem [shape: f32[8,48], index: 9, kind: input, shape index: {}]
  %s10 = inlined_call_operand.vmem [shape: f32[16,32], index: 10, kind: input, shape index: {}]
  %s11 = inlined_call_operand.vmem [shape: f32[16,16], index: 11, kind: input, shape index: {}]
  %s12 = inlined_call_operand.vmem [shape: f32[1,96], index: 12, kind: input, shape index: {}]
  %s13 = inlined_call_operand.hbm [shape: f32[16,16], index: 13, kind: output, shape index: {}]
  %s14 = sld [smem:[#allocation0]]
  $region129: #{tpu_custom_call.1} parent=0
    _
  %s16 = ssub.s32 1, %s14
  %s17 = scalar_select 0, %s16, %s14
  %19 = dma.hbm_to_smem %s0, 16, [#allocation9], [#allocation8]
  %s20 = sshll.u32 %s1, 4
  %s21 = int_to_ptr.vmem [resolvable:$true] %s20
  %23 = dma.vmem_to_smem %s21, 16, [#allocation10], [#allocation8]
  %24 = dma.done [#allocation8], 32
  %25 = sfence
  $region1: #{tpu_custom_call.1} parent=0
    #allocation11 [shape = 'u8[4096]{0}', space=vmem, size = 0x1000, scoped, tag = 'input window, operand 5, single buffered']
    #allocation12 [shape = 's32[2]{0}', space=sflag, size = 0x8, scoped, tag = 'scoped memory for tpu_custom_call.1']
    #allocation13 [shape = 's32[2]{0}', space=sflag, size = 0x8, scoped, tag = 'scoped memory for tpu_custom_call.1']
    #allocation14 [shape = 'u8[8192]{0}', space=vmem, size = 0x2000, scoped, tag = 'output window, operand 0, single buffered']
    %26 = vsyncpa [#allocation12], 0
    %27 = vsyncpa [#allocation13], 0
    loop: start=0, step=1, limit=4
    $region2: #{tpu_custom_call.1} parent=1 // loop_pre_header
      _
    $region3: #{tpu_custom_call.1} parent=1 // loop_header
      %s29 = sphi 0, %s33
      %p30 = scmp.ge.s32.totalorder %s29, 4
      %s36 = sphi 0, %s48
      %s37 = sphi 0, %s44
      %s38 = sphi 0, %s36
      %s39 = sphi 0, %s37
      %s40 = sphi 0, %s38
      %s41 = sphi 0, %s39
      %s49 = sphi 0, %s49
      %s51 = sphi 0, %s49
      %s52 = sphi 0, %s51
      %s66 = sphi 0, %s52
      %s70 = sphi 0, %s70
      %s72 = sphi 0, %s70
      %s73 = sphi 0, %s72
      %s87 = sphi 0, %s73
      %s97 = sphi 0, %s99
      %s100 = sphi 0, %s97
      %s101 = sphi 0, %s100
      %s117 = sphi 0, %s101
      %s121 = sphi 0, %s121
      %s123 = sphi 0, %s121
      %s124 = sphi 0, %s123
      %s138 = sphi 0, %s124
      %s142 = sphi 0, %s142
      %s144 = sphi 0, %s142
      %s145 = sphi 0, %s144
      %s159 = sphi 0, %s145
      %s163 = sphi 0, %s163
      %s165 = sphi 0, %s163
      %s166 = sphi 0, %s165
      %s180 = sphi 0, %s166
      %s184 = sphi 0, %s184
      %s186 = sphi 0, %s184
      %s187 = sphi 0, %s186
      %s201 = sphi 0, %s187
      %s205 = sphi 0, %s205
      %s207 = sphi 0, %s205
      %s208 = sphi 0, %s207
      %s222 = sphi 0, %s208
      %s226 = sphi 0, %s226
      %s228 = sphi 0, %s226
      %s229 = sphi 0, %s228
      %s243 = sphi 0, %s229
      %s247 = sphi 0, %s247
      %s249 = sphi 0, %s247
      %s250 = sphi 0, %s249
      %s264 = sphi 0, %s250
      %s268 = sphi 0, %s268
      %s270 = sphi 0, %s268
      %s271 = sphi 0, %s270
      %s285 = sphi 0, %s271
      %s289 = sphi 0, %s289
      %s291 = sphi 0, %s289
      %s292 = sphi 0, %s291
      %s306 = sphi 0, %s292
    $region4: #{tpu_custom_call.1} parent=1 // loop_header_branch
      %32 = sbr.rel (%p30) target = $region8
    $region5: #{tpu_custom_call.1} parent=1 // loop_body
      %s34 = ssub.s32 %s29, 1
      %s35 = ssub.s32 %s29, 2
      %s42 = sadd.s32 1, %s37
      %p43 = scmp.ge.s32.totalorder %s42, 1
      %s44 = scalar_select %p43, 0, %s42
      %s45 = sadd.s32 1, %s36
      %s46 = scalar_select %p43, %s45, %s36
      %p47 = scmp.ge.s32.totalorder %s46, 2
      %s48 = scalar_select %p47, 0, %s46
      %s50 = sadd.s32 %s49, 1
      %p53 = scmp.eq.s32.totalorder %s29, 1
      %p54 = scmp.ne.s32.totalorder %s49, %s51
      %p55 = scmp.eq.s32.totalorder %s29, 0
      %p56 = por %p54, %p55
      %p57 = scmp.ne.s32.totalorder %s49, %s51
      %p58 = scmp.eq.s32.totalorder %s34, 1
      %p59 = por %p57, %p58
      %p60 = scmp.ne.s32.totalorder %s51, %s52
      %p61 = scmp.eq.s32.totalorder %s34, 0
      %p62 = por %p60, %p61
      %p63 = scmp.ne.s32.totalorder %s51, %s52
      %p64 = scmp.eq.s32.totalorder %s35, 1
      %p65 = por %p63, %p64
      %p67 = scmp.ne.s32.totalorder %s52, %s66
      %p68 = scmp.eq.s32.totalorder %s35, 0
      %p69 = por %p67, %p68
      %s71 = sadd.s32 %s70, 1
      %p74 = scmp.eq.s32.totalorder %s29, 1
      %p75 = scmp.ne.s32.totalorder %s70, %s72
      %p76 = scmp.eq.s32.totalorder %s29, 0
      %p77 = por %p75, %p76
      %p78 = scmp.ne.s32.totalorder %s70, %s72
      %p79 = scmp.eq.s32.totalorder %s34, 1
      %p80 = por %p78, %p79
      %p81 = scmp.ne.s32.totalorder %s72, %s73
      %p82 = scmp.eq.s32.totalorder %s34, 0
      %p83 = por %p81, %p82
      %p84 = scmp.ne.s32.totalorder %s72, %s73
      %p85 = scmp.eq.s32.totalorder %s35, 1
      %p86 = por %p84, %p85
      %p88 = scmp.ne.s32.totalorder %s73, %s87
      %p89 = scmp.eq.s32.totalorder %s35, 0
      %p90 = por %p88, %p89
      %s91 = ssub.s32 1, %s36
      %s92 = smul.u32 %s37, %s91
      %s93 = ssub.s32 1, %s48
      %s94 = smul.u32 %s44, %s93
      %s95 = ssub.s32 %s92, %s94
      %p96 = scmp.eq.s32.totalorder %s95, 0
      %s98 = sadd.s32 %s97, 1
      %s99 = scalar_select %p96, %s97, %s98
      %p102 = pneg %p96
      %p103 = scmp.eq.s32.totalorder %s29, 1
      %p104 = por %p102, %p103
      %p105 = scmp.ne.s32.totalorder %s97, %s100
      %p106 = scmp.eq.s32.totalorder %s29, 0
      %p107 = por %p105, %p106
      %p108 = scmp.ne.s32.totalorder %s97, %s100
      %p109 = scmp.eq.s32.totalorder %s34, 1
      %p110 = por %p108, %p109
      %p111 = scmp.ne.s32.totalorder %s100, %s101
      %p112 = scmp.eq.s32.totalorder %s34, 0
      %p113 = por %p111, %p112
      %p114 = scmp.ne.s32.totalorder %s100, %s101
      %p115 = scmp.eq.s32.totalorder %s35, 1
      %p116 = por %p114, %p115
      %p118 = scmp.ne.s32.totalorder %s101, %s117
      %p119 = scmp.eq.s32.totalorder %s35, 0
      %p120 = por %p118, %p119
      %s122 = sadd.s32 %s121, 1
      %p125 = scmp.eq.s32.totalorder %s29, 1
      %p126 = scmp.ne.s32.totalorder %s121, %s123
      %p127 = scmp.eq.s32.totalorder %s29, 0
      %p128 = por %p126, %p127
      %p129 = scmp.ne.s32.totalorder %s121, %s123
      %p130 = scmp.eq.s32.totalorder %s34, 1
      %p131 = por %p129, %p130
      %p132 = scmp.ne.s32.totalorder %s123, %s124
      %p133 = scmp.eq.s32.totalorder %s34, 0
      %p134 = por %p132, %p133
      %p135 = scmp.ne.s32.totalorder %s123, %s124
      %p136 = scmp.eq.s32.totalorder %s35, 1
      %p137 = por %p135, %p136
      %p139 = scmp.ne.s32.totalorder %s124, %s138
      %p140 = scmp.eq.s32.totalorder %s35, 0
      %p141 = por %p139, %p140
      %s143 = sadd.s32 %s142, 1
      %p146 = scmp.eq.s32.totalorder %s29, 1
      %p147 = scmp.ne.s32.totalorder %s142, %s144
      %p148 = scmp.eq.s32.totalorder %s29, 0
      %p149 = por %p147, %p148
      %p150 = scmp.ne.s32.totalorder %s142, %s144
      %p151 = scmp.eq.s32.totalorder %s34, 1
      %p152 = por %p150, %p151
      %p153 = scmp.ne.s32.totalorder %s144, %s145
      %p154 = scmp.eq.s32.totalorder %s34, 0
      %p155 = por %p153, %p154
      %p156 = scmp.ne.s32.totalorder %s144, %s145
      %p157 = scmp.eq.s32.totalorder %s35, 1
      %p158 = por %p156, %p157
      %p160 = scmp.ne.s32.totalorder %s145, %s159
      %p161 = scmp.eq.s32.totalorder %s35, 0
      %p162 = por %p160, %p161
      %s164 = sadd.s32 %s163, 1
      %p167 = scmp.eq.s32.totalorder %s29, 1
      %p168 = scmp.ne.s32.totalorder %s163, %s165
      %p169 = scmp.eq.s32.totalorder %s29, 0
      %p170 = por %p168, %p169
      %p171 = scmp.ne.s32.totalorder %s163, %s165
      %p172 = scmp.eq.s32.totalorder %s34, 1
      %p173 = por %p171, %p172
      %p174 = scmp.ne.s32.totalorder %s165, %s166
      %p175 = scmp.eq.s32.totalorder %s34, 0
      %p176 = por %p174, %p175
      %p177 = scmp.ne.s32.totalorder %s165, %s166
      %p178 = scmp.eq.s32.totalorder %s35, 1
      %p179 = por %p177, %p178
      %p181 = scmp.ne.s32.totalorder %s166, %s180
      %p182 = scmp.eq.s32.totalorder %s35, 0
      %p183 = por %p181, %p182
      %s185 = sadd.s32 %s184, 1
      %p188 = scmp.eq.s32.totalorder %s29, 1
      %p189 = scmp.ne.s32.totalorder %s184, %s186
      %p190 = scmp.eq.s32.totalorder %s29, 0
      %p191 = por %p189, %p190
      %p192 = scmp.ne.s32.totalorder %s184, %s186
      %p193 = scmp.eq.s32.totalorder %s34, 1
      %p194 = por %p192, %p193
      %p195 = scmp.ne.s32.totalorder %s186, %s187
      %p196 = scmp.eq.s32.totalorder %s34, 0
      %p197 = por %p195, %p196
      %p198 = scmp.ne.s32.totalorder %s186, %s187
      %p199 = scmp.eq.s32.totalorder %s35, 1
      %p200 = por %p198, %p199
      %p202 = scmp.ne.s32.totalorder %s187, %s201
      %p203 = scmp.eq.s32.totalorder %s35, 0
      %p204 = por %p202, %p203
      %s206 = sadd.s32 %s205, 1
      %p209 = scmp.eq.s32.totalorder %s29, 1
      %p210 = scmp.ne.s32.totalorder %s205, %s207
      %p211 = scmp.eq.s32.totalorder %s29, 0
      %p212 = por %p210, %p211
      %p213 = scmp.ne.s32.totalorder %s205, %s207
      %p214 = scmp.eq.s32.totalorder %s34, 1
      %p215 = por %p213, %p214
      %p216 = scmp.ne.s32.totalorder %s207, %s208
      %p217 = scmp.eq.s32.totalorder %s34, 0
      %p218 = por %p216, %p217
      %p219 = scmp.ne.s32.totalorder %s207, %s208
      %p220 = scmp.eq.s32.totalorder %s35, 1
      %p221 = por %p219, %p220
      %p223 = scmp.ne.s32.totalorder %s208, %s222
      %p224 = scmp.eq.s32.totalorder %s35, 0
      %p225 = por %p223, %p224
      %s227 = sadd.s32 %s226, 1
      %p230 = scmp.eq.s32.totalorder %s29, 1
      %p231 = scmp.ne.s32.totalorder %s226, %s228
      %p232 = scmp.eq.s32.totalorder %s29, 0
      %p233 = por %p231, %p232
      %p234 = scmp.ne.s32.totalorder %s226, %s228
      %p235 = scmp.eq.s32.totalorder %s34, 1
      %p236 = por %p234, %p235
      %p237 = scmp.ne.s32.totalorder %s228, %s229
      %p238 = scmp.eq.s32.totalorder %s34, 0
      %p239 = por %p237, %p238
      %p240 = scmp.ne.s32.totalorder %s228, %s229
      %p241 = scmp.eq.s32.totalorder %s35, 1
      %p242 = por %p240, %p241
      %p244 = scmp.ne.s32.totalorder %s229, %s243
      %p245 = scmp.eq.s32.totalorder %s35, 0
      %p246 = por %p244, %p245
      %s248 = sadd.s32 %s247, 1
      %p251 = scmp.eq.s32.totalorder %s29, 1
      %p252 = scmp.ne.s32.totalorder %s247, %s249
      %p253 = scmp.eq.s32.totalorder %s29, 0
      %p254 = por %p252, %p253
      %p255 = scmp.ne.s32.totalorder %s247, %s249
      %p256 = scmp.eq.s32.totalorder %s34, 1
      %p257 = por %p255, %p256
      %p258 = scmp.ne.s32.totalorder %s249, %s250
      %p259 = scmp.eq.s32.totalorder %s34, 0
      %p260 = por %p258, %p259
      %p261 = scmp.ne.s32.totalorder %s249, %s250
      %p262 = scmp.eq.s32.totalorder %s35, 1
      %p263 = por %p261, %p262
      %p265 = scmp.ne.s32.totalorder %s250, %s264
      %p266 = scmp.eq.s32.totalorder %s35, 0
      %p267 = por %p265, %p266
      %s269 = sadd.s32 %s268, 1
      %p272 = scmp.eq.s32.totalorder %s29, 1
      %p273 = scmp.ne.s32.totalorder %s268, %s270
      %p274 = scmp.eq.s32.totalorder %s29, 0
      %p275 = por %p273, %p274
      %p276 = scmp.ne.s32.totalorder %s268, %s270
      %p277 = scmp.eq.s32.totalorder %s34, 1
      %p278 = por %p276, %p277
      %p279 = scmp.ne.s32.totalorder %s270, %s271
      %p280 = scmp.eq.s32.totalorder %s34, 0
      %p281 = por %p279, %p280
      %p282 = scmp.ne.s32.totalorder %s270, %s271
      %p283 = scmp.eq.s32.totalorder %s35, 1
      %p284 = por %p282, %p283
      %p286 = scmp.ne.s32.totalorder %s271, %s285
      %p287 = scmp.eq.s32.totalorder %s35, 0
      %p288 = por %p286, %p287
      %s290 = sadd.s32 %s289, 1
      %p293 = scmp.eq.s32.totalorder %s29, 1
      %p294 = scmp.ne.s32.totalorder %s289, %s291
      %p295 = scmp.eq.s32.totalorder %s29, 0
      %p296 = por %p294, %p295
      %p297 = scmp.ne.s32.totalorder %s289, %s291
      %p298 = scmp.eq.s32.totalorder %s34, 1
      %p299 = por %p297, %p298
      %p300 = scmp.ne.s32.totalorder %s291, %s292
      %p301 = scmp.eq.s32.totalorder %s34, 0
      %p302 = por %p300, %p301
      %p303 = scmp.ne.s32.totalorder %s291, %s292
      %p304 = scmp.eq.s32.totalorder %s35, 1
      %p305 = por %p303, %p304
      %p307 = scmp.ne.s32.totalorder %s292, %s306
      %p308 = scmp.eq.s32.totalorder %s35, 0
      %p309 = por %p307, %p308
      %p310 = scmp.le.s32.totalorder 1, %s29
      %p311 = scmp.lt.s32.totalorder %s29, 3
      %p312 = pnand %p310, %p311
      %p313 = pneg %p312
      // Predicated region
      $region9: #{tpu_custom_call.1} parent=5 // pred_check
        _
      $region10: #{tpu_custom_call.1} parent=5 // pred_check_branch
        %315 = sbr.rel (%p312) target = $region12
      $region11: #{tpu_custom_call.1} parent=5 // pred_region
        %s316 = ssub.s32 %s29, 1
        // Predicated region
        $region13: #{tpu_custom_call.1} parent=11 // pred_check
          %p317 = pneg %p62
        $region14: #{tpu_custom_call.1} parent=11 // pred_check_branch
          %319 = sbr.rel (%p317) target = $region16
        $region15: #{tpu_custom_call.1} parent=11 // pred_region
          _
        $region16: #{tpu_custom_call.1} parent=11 // pred_fallthru
          _
        // Predicated region
        $region17: #{tpu_custom_call.1} parent=11 // pred_check
          %p320 = pneg %p83
        $region18: #{tpu_custom_call.1} parent=11 // pred_check_branch
          %322 = sbr.rel (%p320) target = $region20
        $region19: #{tpu_custom_call.1} parent=11 // pred_region
          _
        $region20: #{tpu_custom_call.1} parent=11 // pred_fallthru
          _
        // Predicated region
        $region21: #{tpu_custom_call.1} parent=11 // pred_check
          %p323 = pneg %p134
        $region22: #{tpu_custom_call.1} parent=11 // pred_check_branch
          %325 = sbr.rel (%p323) target = $region24
        $region23: #{tpu_custom_call.1} parent=11 // pred_region
          %s327 = ssub.s32 128, 128
          %328 = vsyncadd [#allocation12], %s327
          %s330 = sshll.u32 [#allocation11], 4
          %s331 = int_to_ptr.vmem [resolvable:$true] %s330
          %333 = dma.hbm_to_vmem [thread:$0]  %s5, 128, %s331, [#allocation12]
        $region24: #{tpu_custom_call.1} parent=11 // pred_fallthru
          _
        // Predicated region
        $region25: #{tpu_custom_call.1} parent=11 // pred_check
          %p334 = pneg %p155
        $region26: #{tpu_custom_call.1} parent=11 // pred_check_branch
          %336 = sbr.rel (%p334) target = $region28
        $region27: #{tpu_custom_call.1} parent=11 // pred_region
          _
        $region28: #{tpu_custom_call.1} parent=11 // pred_fallthru
          _
        // Predicated region
        $region29: #{tpu_custom_call.1} parent=11 // pred_check
          %p337 = pneg %p176
        $region30: #{tpu_custom_call.1} parent=11 // pred_check_branch
          %339 = sbr.rel (%p337) target = $region32
        $region31: #{tpu_custom_call.1} parent=11 // pred_region
          _
        $region32: #{tpu_custom_call.1} parent=11 // pred_fallthru
          _
        // Predicated region
        $region33: #{tpu_custom_call.1} parent=11 // pred_check
          %p340 = pneg %p197
        $region34: #{tpu_custom_call.1} parent=11 // pred_check_branch
          %342 = sbr.rel (%p340) target = $region36
        $region35: #{tpu_custom_call.1} parent=11 // pred_region
          _
        $region36: #{tpu_custom_call.1} parent=11 // pred_fallthru
          _
        // Predicated region
        $region37: #{tpu_custom_call.1} parent=11 // pred_check
          %p343 = pneg %p218
        $region38: #{tpu_custom_call.1} parent=11 // pred_check_branch
          %345 = sbr.rel (%p343) target = $region40
        $region39: #{tpu_custom_call.1} parent=11 // pred_region
          _
        $region40: #{tpu_custom_call.1} parent=11 // pred_fallthru
          _
        // Predicated region
        $region41: #{tpu_custom_call.1} parent=11 // pred_check
          %p346 = pneg %p239
        $region42: #{tpu_custom_call.1} parent=11 // pred_check_branch
          %348 = sbr.rel (%p346) target = $region44
        $region43: #{tpu_custom_call.1} parent=11 // pred_region
          _
        $region44: #{tpu_custom_call.1} parent=11 // pred_fallthru
          _
        // Predicated region
        $region45: #{tpu_custom_call.1} parent=11 // pred_check
          %p349 = pneg %p260
        $region46: #{tpu_custom_call.1} parent=11 // pred_check_branch
          %351 = sbr.rel (%p349) target = $region48
        $region47: #{tpu_custom_call.1} parent=11 // pred_region
          _
        $region48: #{tpu_custom_call.1} parent=11 // pred_fallthru
          _
        // Predicated region
        $region49: #{tpu_custom_call.1} parent=11 // pred_check
          %p352 = pneg %p281
        $region50: #{tpu_custom_call.1} parent=11 // pred_check_branch
          %354 = sbr.rel (%p352) target = $region52
        $region51: #{tpu_custom_call.1} parent=11 // pred_region
          _
        $region52: #{tpu_custom_call.1} parent=11 // pred_fallthru
          _
      $region12: #{tpu_custom_call.1} parent=5 // pred_fallthru
        _
      %p355 = scmp.lt.s32.totalorder %s29, 2
      // Predicated region
      $region53: #{tpu_custom_call.1} parent=5 // pred_check
        %p356 = pneg %p355
      $region54: #{tpu_custom_call.1} parent=5 // pred_check_branch
        %358 = sbr.rel (%p356) target = $region56
      $region55: #{tpu_custom_call.1} parent=5 // pred_region
        // Predicated region
        $region57: #{tpu_custom_call.1} parent=55 // pred_check
          %p359 = pneg %p107
        $region58: #{tpu_custom_call.1} parent=55 // pred_check_branch
          %361 = sbr.rel (%p359) target = $region60
        $region59: #{tpu_custom_call.1} parent=55 // pred_region
          %s362 = ssub.s32 1, %s36
          %s363 = smul.u32 %s37, %s362
          %s364 = smul.u32 4, %s363
          %p365 = scmp.lt.s32.totalorder %s364, 3
          %s366 = scalar_select %p365, %s364, 3
          %s367 = smul.addr %s366, 8
          %s368 = scalar_lea.vmem %s4, %s367
          %s369 = ssub.s32 1, %s36
          %s370 = smul.u32 %s37, %s369
          %s371 = smul.u32 4, %s370
        $region60: #{tpu_custom_call.1} parent=55 // pred_fallthru
          _
      $region56: #{tpu_custom_call.1} parent=5 // pred_fallthru
        _
      %p372 = scmp.le.s32.totalorder 1, %s29
      %p373 = scmp.lt.s32.totalorder %s29, 3
      %p374 = pnand %p372, %p373
      %p375 = pneg %p374
      // Predicated region
      $region61: #{tpu_custom_call.1} parent=5 // pred_check
        _
      $region62: #{tpu_custom_call.1} parent=5 // pred_check_branch
        %377 = sbr.rel (%p374) target = $region64
      $region63: #{tpu_custom_call.1} parent=5 // pred_region
        %s378 = ssub.s32 %s29, 1
        // Predicated region
        $region65: #{tpu_custom_call.1} parent=63 // pred_check
          %p379 = pneg %p134
        $region66: #{tpu_custom_call.1} parent=63 // pred_check_branch
          %381 = sbr.rel (%p379) target = $region68
        $region67: #{tpu_custom_call.1} parent=63 // pred_region
          %382 = dma.done [#allocation12], 128
        $region68: #{tpu_custom_call.1} parent=63 // pred_fallthru
          _
        %p383 = pneg %p62
        %p384 = pneg %p59
        %p385 = pneg %p83
        %p386 = pneg %p80
        %s387 = ssub.s32 1, %s38
        %s388 = smul.u32 %s39, %s387
        %s389 = smul.u32 4, %s388
        %p390 = scmp.lt.s32.totalorder %s389, 3
        %s391 = scalar_select %p390, %s389, 3
        %s392 = smul.addr %s391, 8
        %s393 = scalar_lea.vmem %s4, %s392
        %p394 = pneg %p113
        %p395 = pneg %p110
        %p396 = pneg %p134
        %p397 = pneg %p131
        %p398 = pneg %p155
        %p399 = pneg %p152
        %p400 = pneg %p176
        %p401 = pneg %p173
        %p402 = pneg %p197
        %p403 = pneg %p194
        %p404 = pneg %p218
        %p405 = pneg %p215
        %p406 = pneg %p239
        %p407 = pneg %p236
        %p408 = pneg %p260
        %p409 = pneg %p257
        %p410 = pneg %p281
        %p411 = pneg %p278
        %p412 = pneg %p302
        %p413 = pneg %p299
        %s414 = ssub.s32 1, %s38
        %s415 = smul.u32 %s39, %s414
        %s416 = smul.u32 4, %s415
        %p417 = scmp.lt.s32.totalorder %s416, 3
        %s418 = scalar_select %p417, %s416, 3
        %s419 = smul.addr %s418, 8
        %s420 = scalar_lea.vmem %s4, %s419
        %s421 = ssub.s32 1, %s38
        %s422 = smul.u32 %s39, %s421
        %s423 = smul.u32 4, %s422
        %s424 = smul.u32 %s39, 32
        %v425 = vlaneseq
        %v426 = vshrl.u32 %v425, 7
        %v427 = vadd.s32 %v426, 8
        %v428 = vadd.s32 %v426, 16
        %v429 = vadd.s32 %v426, 24
        %v430 = vstv %s424
        %v431 = vadd.s32 %v426, %v430
        %v432 = vadd.s32 %v427, %v430
        %v433 = vadd.s32 %v428, %v430
        %v434 = vadd.s32 %v429, %v430
        %vm435 = vcmp.lt.s32.totalorder %v431, 32
        %vm436 = vcmp.lt.s32.totalorder %v432, 32
        %vm437 = vcmp.lt.s32.totalorder %v433, 32
        %vm438 = vcmp.lt.s32.totalorder %v434, 32
        %v439 = vsel %vm435, 1, 0
        %v440 = vsel %vm436, 1, 0
        %v441 = vsel %vm437, 1, 0
        %v442 = vsel %vm438, 1, 0
        %v443 = vcvt.s32.f32 %v439
        %v444 = vcvt.s32.f32 %v440
        %v445 = vcvt.s32.f32 %v441
        %v446 = vcvt.s32.f32 %v442
        %p447 = scmp.eq.s32.totalorder %s38, 0
        %p448 = scmp.eq.s32.totalorder %s39, 0
        %p449 = pnand %p447, %p448
        %p450 = pneg %p449
        // Predicated region
        $region69: #{tpu_custom_call.1} parent=63 // pred_check
          _
        $region70: #{tpu_custom_call.1} parent=63 // pred_check_branch
          %452 = sbr.rel (%p449) target = $region72
        $region71: #{tpu_custom_call.1} parent=63 // pred_region
          %vm453 = vcmask 785408
          %454 = vst.msk [vmem:[#allocation2] sm:$0xff] %vm453, 0.0
          %455 = vst.msk [vmem:[#allocation2 + $0x8] sm:$0xff] %vm453, 0.0
        $region72: #{tpu_custom_call.1} parent=63 // pred_fallthru
          _
        // Predicated region
        $region73: #{tpu_custom_call.1} parent=63 // pred_check
          %p456 = pneg %p447
        $region74: #{tpu_custom_call.1} parent=63 // pred_check_branch
          %458 = sbr.rel (%p456) target = $region76
        $region75: #{tpu_custom_call.1} parent=63 // pred_region
          loop: start=0, step=1, limit=32
          $region77: #{tpu_custom_call.1} parent=75 // loop_pre_header
            _
          $region78: #{tpu_custom_call.1} parent=75 // loop_header
            %s460 = sphi 0, %s464
            %p461 = scmp.ge.s32.totalorder %s460, 32
          $region79: #{tpu_custom_call.1} parent=75 // loop_header_branch
            %463 = sbr.rel (%p461) target = $region83
          $region80: #{tpu_custom_call.1} parent=75 // loop_body
            %s465 = sadd.s32 %s424, %s460
            %s466 = sld [smem:[#allocation9 + %s465]]
            %s467 = scalar_lea.vmem %s2, %s466
            %v468 = vld [vmem:[%s467] sm:$0x1]
            %s469 = scalar_lea.vmem [#allocation5], %s460
            %vm470 = vcmask 57344
            %471 = vst.msk [vmem:[%s469] sm:$0x1] %vm470, %v468
            %s472 = scalar_lea.vmem %s3, %s466
            %v473 = vld [vmem:[%s472] sm:$0x1]
            %s474 = scalar_lea.vmem [#allocation6], %s460
            %vm475 = vcmask 122880
            %476 = vst.msk [vmem:[%s474] sm:$0x1] %vm475, %v473
          $region81: #{tpu_custom_call.1} parent=75 // loop_footer
            %s464 = sadd.s32 1, %s460
          $region82: #{tpu_custom_call.1} parent=75 // loop_footer_branch
            %459 = sbr.rel target = $region78
          $region83: #{tpu_custom_call.1} parent=75 // loop_exit
            _
          %v477 = vld [vmem:[#allocation5] sm:$0xff]
          %v478 = vld [vmem:[#allocation5 + $0x8] sm:$0xff]
          %v479 = vld [vmem:[#allocation5 + $0x10] sm:$0xff]
          %v480 = vld [vmem:[#allocation5 + $0x18] sm:$0xff]
          %v481 = vmul.f32 %v477, %v443
          %v482 = vmul.f32 %v478, %v444
          %v483 = vmul.f32 %v479, %v445
          %v484 = vmul.f32 %v480, %v446
          %v485 = vld [vmem:[#allocation11] sm:$0xff]
          %vm486 = vcmask 64512
          %v488 = vsel %vm486, %v481, 0
          %v491 = vsel %vm486, %v482, 0
          %v494 = vsel %vm486, %v483, 0
          %v497 = vsel %vm486, %v484, 0
          %499 = vmatprep.subr.mxu0 0.0
          %500 = vmatpush1.msra.mxu0 %v485
          %501 = vmatprep.subr.mxu0 0.0
          %502 = vmatpush1.msra.mxu0 0.0
          %503 = vmatprep.subr.mxu0 0.0
          %504 = vmatpush1.msra.mxu0 0.0
          %505 = vmatprep.subr.mxu0 0.0
          %506 = vmatpush1.msra.mxu0 0.0
          %507 = vmatprep.subr.mxu0 0.0
          %508 = vmatpush1.msra.mxu0 0.0
          %509 = vmatprep.subr.mxu0 0.0
          %510 = vmatpush1.msra.mxu0 0.0
          %511 = vmatprep.subr.mxu0 0.0
          %512 = vmatpush1.msra.mxu0 0.0
          %513 = vmatprep.subr.mxu0 0.0
          %514 = vmatpush1.msra.mxu0 0.0
          %515 = vmatprep.subr.mxu0 0.0
          %516 = vmatpush1.msra.mxu0 0.0
          %517 = vmatprep.subr.mxu0 0.0
          %518 = vmatpush1.msra.mxu0 0.0
          %519 = vmatprep.subr.mxu0 0.0
          %520 = vmatpush1.msra.mxu0 0.0
          %521 = vmatprep.subr.mxu0 0.0
          %522 = vmatpush1.msra.mxu0 0.0
          %523 = vmatprep.subr.mxu0 0.0
          %524 = vmatpush1.msra.mxu0 0.0
          %525 = vmatprep.subr.mxu0 0.0
          %526 = vmatpush1.msra.mxu0 0.0
          %527 = vmatprep.subr.mxu0 0.0
          %528 = vmatpush1.msra.mxu0 0.0
          %529 = vmatprep.subr.mxu0 0.0
          %530 = vmatpush1.msra.mxu0 0.0
          %531 = vmatprep.subr.mxu0 0.0
          %532 = vmatpush1.msra.mxu0 0.0
          %533 = vmatprep.subr.mxu0 0.0
          %534 = vmatpush1.msra.mxu0 0.0
          %535 = vmatprep.subr.mxu0 0.0
          %536 = vmatpush1.msra.mxu0 0.0
          %537 = vmatprep.subr.mxu0 0.0
          %538 = vmatpush1.msra.mxu0 0.0
          %539 = vmatprep.subr.mxu0 0.0
          %540 = vmatpush1.msra.mxu0 0.0
          %541 = vmatprep.subr.mxu0 0.0
          %542 = vmatpush1.msra.mxu0 0.0
          %543 = vmatprep.subr.mxu0 0.0
          %544 = vmatpush1.msra.mxu0 0.0
          %545 = vmatprep.subr.mxu0 0.0
          %546 = vmatpush1.msra.mxu0 0.0
          %547 = vmatprep.subr.mxu0 0.0
          %548 = vmatpush1.msra.mxu0 0.0
          %549 = vmatprep.subr.mxu0 0.0
          %550 = vmatpush1.msra.mxu0 0.0
          %551 = vmatprep.subr.mxu0 0.0
          %552 = vmatpush1.msra.mxu0 0.0
          %553 = vmatprep.subr.mxu0 0.0
          %554 = vmatpush1.msra.mxu0 0.0
          %555 = vmatprep.subr.mxu0 0.0
          %556 = vmatpush1.msra.mxu0 0.0
          %557 = vmatprep.subr.mxu0 0.0
          %558 = vmatpush1.msra.mxu0 0.0
          %559 = vmatprep.subr.mxu0 0.0
          %560 = vmatpush1.msra.mxu0 0.0
          %561 = vmatprep.subr.mxu0 0.0
          %562 = vmatpush1.msra.mxu0 0.0
          %563 = vmatprep.mubr.f32.mxu0 0.0
          %564 = vmatmul.mubr.f32.gmra.mrb[0].mxu0 %v488
          %v565 = vpop.f32.mrb[0].mxu0
          %v566 = vadd.f32 0.0, %v565
          %v567 = vpop.f32.mrb[0].mxu0
          %568 = vmatprep.mubr.f32.mxu0 0.0
          %569 = vmatmul.mubr.f32.gmra.mrb[0].mxu0 %v491
          %v570 = vpop.f32.mrb[0].mxu0
          %v571 = vadd.f32 0.0, %v570
          %v572 = vpop.f32.mrb[0].mxu0
          %573 = vmatprep.mubr.f32.mxu0 0.0
          %574 = vmatmul.mubr.f32.gmra.mrb[0].mxu0 %v494
          %v575 = vpop.f32.mrb[0].mxu0
          %v576 = vadd.f32 0.0, %v575
          %v577 = vpop.f32.mrb[0].mxu0
          %578 = vmatprep.mubr.f32.mxu0 0.0
          %579 = vmatmul.mubr.f32.gmra.mrb[0].mxu0 %v497
          %v580 = vpop.f32.mrb[0].mxu0
          %v581 = vadd.f32 0.0, %v580
          %v582 = vpop.f32.mrb[0].mxu0
          %583 = vdwg.mxu0
          %v584 = vld [vmem:[#allocation6] sm:$0xff]
          %v585 = vld [vmem:[#allocation6 + $0x8] sm:$0xff]
          %v586 = vld [vmem:[#allocation6 + $0x10] sm:$0xff]
          %v587 = vld [vmem:[#allocation6 + $0x18] sm:$0xff]
          %v588 = vmul.f32 %v584, %v443
          %v589 = vmul.f32 %v585, %v444
          %v590 = vmul.f32 %v586, %v445
          %v591 = vmul.f32 %v587, %v446
          %v592 = vld [vmem:[%s6] sm:$0xff]
          %v593 = vld [vmem:[%s6 + $0x8] sm:$0xff]
          %vm594 = vcmask 130048
          %v596 = vsel %vm594, %v588, 0
          %v599 = vsel %vm594, %v589, 0
          %v602 = vsel %vm594, %v590, 0
          %v605 = vsel %vm594, %v591, 0
          %607 = vmatprep.subr.mxu0 0.0
          %608 = vmatpush1.msra.mxu0 %v592
          %609 = vmatprep.subr.mxu0 0.0
          %610 = vmatpush1.msra.mxu0 %v593
          %611 = vmatprep.subr.mxu0 0.0
          %612 = vmatpush1.msra.mxu0 0.0
          %613 = vmatprep.subr.mxu0 0.0
          %614 = vmatpush1.msra.mxu0 0.0
          %615 = vmatprep.subr.mxu0 0.0
          %616 = vmatpush1.msra.mxu0 0.0
          %617 = vmatprep.subr.mxu0 0.0
          %618 = vmatpush1.msra.mxu0 0.0
          %619 = vmatprep.subr.mxu0 0.0
          %620 = vmatpush1.msra.mxu0 0.0
          %621 = vmatprep.subr.mxu0 0.0
          %622 = vmatpush1.msra.mxu0 0.0
          %623 = vmatprep.subr.mxu0 0.0
          %624 = vmatpush1.msra.mxu0 0.0
          %625 = vmatprep.subr.mxu0 0.0
          %626 = vmatpush1.msra.mxu0 0.0
          %627 = vmatprep.subr.mxu0 0.0
          %628 = vmatpush1.msra.mxu0 0.0
          %629 = vmatprep.subr.mxu0 0.0
          %630 = vmatpush1.msra.mxu0 0.0
          %631 = vmatprep.subr.mxu0 0.0
          %632 = vmatpush1.msra.mxu0 0.0
          %633 = vmatprep.subr.mxu0 0.0
          %634 = vmatpush1.msra.mxu0 0.0
          %635 = vmatprep.subr.mxu0 0.0
          %636 = vmatpush1.msra.mxu0 0.0
          %637 = vmatprep.subr.mxu0 0.0
          %638 = vmatpush1.msra.mxu0 0.0
          %639 = vmatprep.subr.mxu0 0.0
          %640 = vmatpush1.msra.mxu0 0.0
          %641 = vmatprep.subr.mxu0 0.0
          %642 = vmatpush1.msra.mxu0 0.0
          %643 = vmatprep.subr.mxu0 0.0
          %644 = vmatpush1.msra.mxu0 0.0
          %645 = vmatprep.subr.mxu0 0.0
          %646 = vmatpush1.msra.mxu0 0.0
          %647 = vmatprep.subr.mxu0 0.0
          %648 = vmatpush1.msra.mxu0 0.0
          %649 = vmatprep.subr.mxu0 0.0
          %650 = vmatpush1.msra.mxu0 0.0
          %651 = vmatprep.subr.mxu0 0.0
          %652 = vmatpush1.msra.mxu0 0.0
          %653 = vmatprep.subr.mxu0 0.0
          %654 = vmatpush1.msra.mxu0 0.0
          %655 = vmatprep.subr.mxu0 0.0
          %656 = vmatpush1.msra.mxu0 0.0
          %657 = vmatprep.subr.mxu0 0.0
          %658 = vmatpush1.msra.mxu0 0.0
          %659 = vmatprep.subr.mxu0 0.0
          %660 = vmatpush1.msra.mxu0 0.0
          %661 = vmatprep.subr.mxu0 0.0
          %662 = vmatpush1.msra.mxu0 0.0
          %663 = vmatprep.subr.mxu0 0.0
          %664 = vmatpush1.msra.mxu0 0.0
          %665 = vmatprep.subr.mxu0 0.0
          %666 = vmatpush1.msra.mxu0 0.0
          %667 = vmatprep.subr.mxu0 0.0
          %668 = vmatpush1.msra.mxu0 0.0
          %669 = vmatprep.subr.mxu0 0.0
          %670 = vmatpush1.msra.mxu0 0.0
          %671 = vmatprep.mubr.f32.mxu0 0.0
          %672 = vmatmul.mubr.f32.gmra.mrb[0].mxu0 %v596
          %v673 = vpop.f32.mrb[0].mxu0
          %v674 = vadd.f32 0.0, %v673
          %v675 = vpop.f32.mrb[0].mxu0
          %676 = vmatprep.mubr.f32.mxu0 0.0
          %677 = vmatmul.mubr.f32.gmra.mrb[0].mxu0 %v599
          %v678 = vpop.f32.mrb[0].mxu0
          %v679 = vadd.f32 0.0, %v678
          %v680 = vpop.f32.mrb[0].mxu0
          %681 = vmatprep.mubr.f32.mxu0 0.0
          %682 = vmatmul.mubr.f32.gmra.mrb[0].mxu0 %v602
          %v683 = vpop.f32.mrb[0].mxu0
          %v684 = vadd.f32 0.0, %v683
          %v685 = vpop.f32.mrb[0].mxu0
          %686 = vmatprep.mubr.f32.mxu0 0.0
          %687 = vmatmul.mubr.f32.gmra.mrb[0].mxu0 %v605
          %v688 = vpop.f32.mrb[0].mxu0
          %v689 = vadd.f32 0.0, %v688
          %v690 = vpop.f32.mrb[0].mxu0
          %691 = vdwg.mxu0
          %v692 = vld [vmem:[%s420] sm:$0xff]
          %v693 = vld [vmem:[%s420 + $0x8] sm:$0xff]
          %v694 = vld [vmem:[%s420 + $0x10] sm:$0xff]
          %v695 = vld [vmem:[%s420 + $0x18] sm:$0xff]
          %v696 = vmul.f32 %v692, %v443
          %v697 = vmul.f32 %v693, %v444
          %v698 = vmul.f32 %v694, %v445
          %v699 = vmul.f32 %v695, %v446
          %v700 = vld [vmem:[%s8] sm:$0xff]
          %v702 = vsel %vm486, %v696, 0
          %v705 = vsel %vm486, %v697, 0
          %v708 = vsel %vm486, %v698, 0
          %v711 = vsel %vm486, %v699, 0
          %713 = vmatprep.subr.mxu0 0.0
          %714 = vmatpush1.msra.mxu0 %v700
          %715 = vmatprep.subr.mxu0 0.0
          %716 = vmatpush1.msra.mxu0 0.0
          %717 = vmatprep.subr.mxu0 0.0
          %718 = vmatpush1.msra.mxu0 0.0
          %719 = vmatprep.subr.mxu0 0.0
          %720 = vmatpush1.msra.mxu0 0.0
          %721 = vmatprep.subr.mxu0 0.0
          %722 = vmatpush1.msra.mxu0 0.0
          %723 = vmatprep.subr.mxu0 0.0
          %724 = vmatpush1.msra.mxu0 0.0
          %725 = vmatprep.subr.mxu0 0.0
          %726 = vmatpush1.msra.mxu0 0.0
          %727 = vmatprep.subr.mxu0 0.0
          %728 = vmatpush1.msra.mxu0 0.0
          %729 = vmatprep.subr.mxu0 0.0
          %730 = vmatpush1.msra.mxu0 0.0
          %731 = vmatprep.subr.mxu0 0.0
          %732 = vmatpush1.msra.mxu0 0.0
          %733 = vmatprep.subr.mxu0 0.0
          %734 = vmatpush1.msra.mxu0 0.0
          %735 = vmatprep.subr.mxu0 0.0
          %736 = vmatpush1.msra.mxu0 0.0
          %737 = vmatprep.subr.mxu0 0.0
          %738 = vmatpush1.msra.mxu0 0.0
          %739 = vmatprep.subr.mxu0 0.0
          %740 = vmatpush1.msra.mxu0 0.0
          %741 = vmatprep.subr.mxu0 0.0
          %742 = vmatpush1.msra.mxu0 0.0
          %743 = vmatprep.subr.mxu0 0.0
          %744 = vmatpush1.msra.mxu0 0.0
          %745 = vmatprep.subr.mxu0 0.0
          %746 = vmatpush1.msra.mxu0 0.0
          %747 = vmatprep.subr.mxu0 0.0
          %748 = vmatpush1.msra.mxu0 0.0
          %749 = vmatprep.subr.mxu0 0.0
          %750 = vmatpush1.msra.mxu0 0.0
          %751 = vmatprep.subr.mxu0 0.0
          %752 = vmatpush1.msra.mxu0 0.0
          %753 = vmatprep.subr.mxu0 0.0
          %754 = vmatpush1.msra.mxu0 0.0
          %755 = vmatprep.subr.mxu0 0.0
          %756 = vmatpush1.msra.mxu0 0.0
          %757 = vmatprep.subr.mxu0 0.0
          %758 = vmatpush1.msra.mxu0 0.0
          %759 = vmatprep.subr.mxu0 0.0
          %760 = vmatpush1.msra.mxu0 0.0
          %761 = vmatprep.subr.mxu0 0.0
          %762 = vmatpush1.msra.mxu0 0.0
          %763 = vmatprep.subr.mxu0 0.0
          %764 = vmatpush1.msra.mxu0 0.0
          %765 = vmatprep.subr.mxu0 0.0
          %766 = vmatpush1.msra.mxu0 0.0
          %767 = vmatprep.subr.mxu0 0.0
          %768 = vmatpush1.msra.mxu0 0.0
          %769 = vmatprep.subr.mxu0 0.0
          %770 = vmatpush1.msra.mxu0 0.0
          %771 = vmatprep.subr.mxu0 0.0
          %772 = vmatpush1.msra.mxu0 0.0
          %773 = vmatprep.subr.mxu0 0.0
          %774 = vmatpush1.msra.mxu0 0.0
          %775 = vmatprep.subr.mxu0 0.0
          %776 = vmatpush1.msra.mxu0 0.0
          %777 = vmatprep.mubr.f32.mxu0 0.0
          %778 = vmatmul.mubr.f32.gmra.mrb[0].mxu0 %v702
          %v779 = vpop.f32.mrb[0].mxu0
          %v780 = vadd.f32 0.0, %v779
          %v781 = vpop.f32.mrb[0].mxu0
          %782 = vmatprep.mubr.f32.mxu0 0.0
          %783 = vmatmul.mubr.f32.gmra.mrb[0].mxu0 %v705
          %v784 = vpop.f32.mrb[0].mxu0
          %v785 = vadd.f32 0.0, %v784
          %v786 = vpop.f32.mrb[0].mxu0
          %787 = vmatprep.mubr.f32.mxu0 0.0
          %788 = vmatmul.mubr.f32.gmra.mrb[0].mxu0 %v708
          %v789 = vpop.f32.mrb[0].mxu0
          %v790 = vadd.f32 0.0, %v789
          %v791 = vpop.f32.mrb[0].mxu0
          %792 = vmatprep.mubr.f32.mxu0 0.0
          %793 = vmatmul.mubr.f32.gmra.mrb[0].mxu0 %v711
          %v794 = vpop.f32.mrb[0].mxu0
          %v795 = vadd.f32 0.0, %v794
          %v796 = vpop.f32.mrb[0].mxu0
          %797 = vdwg.mxu0
          %vm798 = vcmask 785408
          %799 = vst.msk [vmem:[#allocation7] sm:$0xff] %vm798, %v780
          %800 = vst.msk [vmem:[#allocation7 + $0x8] sm:$0xff] %vm798, %v785
          %801 = vst.msk [vmem:[#allocation7 + $0x10] sm:$0xff] %vm798, %v790
          %802 = vst.msk [vmem:[#allocation7 + $0x18] sm:$0xff] %vm798, %v795
          %v803 = vld [vmem:[#allocation7] sm:$0xff]
          %v804 = vld [vmem:[#allocation7 + $0x8] sm:$0xff]
          %v805 = vld [vmem:[#allocation7 + $0x10] sm:$0xff]
          %v806 = vld [vmem:[#allocation7 + $0x18] sm:$0xff]
          %v807 = vadd.f32 %v803, %v566
          %v808 = vadd.f32 %v804, %v571
          %v809 = vadd.f32 %v805, %v576
          %v810 = vadd.f32 %v806, %v581
          %vm811 = vcmask 392192
          %812 = vst.msk [vmem:[#allocation7] sm:$0xff] %vm811, %v807
          %813 = vst.msk [vmem:[#allocation7 + $0x8] sm:$0xff] %vm811, %v808
          %814 = vst.msk [vmem:[#allocation7 + $0x10] sm:$0xff] %vm811, %v809
          %815 = vst.msk [vmem:[#allocation7 + $0x18] sm:$0xff] %vm811, %v810
          %v816 = vld [vmem:[#allocation7] sm:$0xff]
          %v817 = vld [vmem:[#allocation7 + $0x8] sm:$0xff]
          %v818 = vld [vmem:[#allocation7 + $0x10] sm:$0xff]
          %v819 = vld [vmem:[#allocation7 + $0x18] sm:$0xff]
          %824 = vrot.lane.b32.xlu0 %v674, 48
          %v825 = vpop.permute.xlu0 %824
          %826 = vrot.lane.b32.xlu0 %v679, 48
          %v827 = vpop.permute.xlu0 %826
          %828 = vrot.lane.b32.xlu0 %v684, 48
          %v829 = vpop.permute.xlu0 %828
          %830 = vrot.lane.b32.xlu0 %v689, 48
          %v831 = vpop.permute.xlu0 %830
          %v836 = vadd.f32 %v816, %v825
          %v837 = vadd.f32 %v817, %v827
          %v838 = vadd.f32 %v818, %v829
          %v839 = vadd.f32 %v819, %v831
          %vm840 = vcmask 654720
          %841 = vst.msk [vmem:[#allocation7] sm:$0xff] %vm840, %v836
          %842 = vst.msk [vmem:[#allocation7 + $0x8] sm:$0xff] %vm840, %v837
          %843 = vst.msk [vmem:[#allocation7 + $0x10] sm:$0xff] %vm840, %v838
          %844 = vst.msk [vmem:[#allocation7 + $0x18] sm:$0xff] %vm840, %v839
          loop: start=0, step=1, limit=32
          $region84: #{tpu_custom_call.1} parent=75 // loop_pre_header
            _
          $region85: #{tpu_custom_call.1} parent=75 // loop_header
            %s846 = sphi 0, %s850
            %p847 = scmp.ge.s32.totalorder %s846, 32
          $region86: #{tpu_custom_call.1} parent=75 // loop_header_branch
            %849 = sbr.rel (%p847) target = $region90
          $region87: #{tpu_custom_call.1} parent=75 // loop_body
            %s851 = sadd.s32 %s424, %s846
            %s852 = sld [smem:[#allocation10 + %s851]]
            %s853 = scalar_lea.vmem [#allocation2], %s852
            %v854 = vld [vmem:[%s853] sm:$0x1]
            %s855 = scalar_lea.vmem [#allocation7], %s846
            %v856 = vld [vmem:[%s855] sm:$0x1]
            %v857 = vadd.f32 %v854, %v856
            %vm858 = vcmask 778240
            %859 = vst.msk [vmem:[%s853] sm:$0x1] %vm858, %v857
          $region88: #{tpu_custom_call.1} parent=75 // loop_footer
            %s850 = sadd.s32 1, %s846
          $region89: #{tpu_custom_call.1} parent=75 // loop_footer_branch
            %845 = sbr.rel target = $region85
          $region90: #{tpu_custom_call.1} parent=75 // loop_exit
            _
        $region76: #{tpu_custom_call.1} parent=63 // pred_fallthru
          _
        // Predicated region
        $region91: #{tpu_custom_call.1} parent=63 // pred_check
          _
        $region92: #{tpu_custom_call.1} parent=63 // pred_check_branch
          %861 = sbr.rel (%p449) target = $region94
        $region93: #{tpu_custom_call.1} parent=63 // pred_region
          %v862 = vld [vmem:[%s2] sm:$0xff]
          %v863 = vld [vmem:[%s2 + $0x8] sm:$0xff]
          %v864 = vld [vmem:[%s3] sm:$0xff]
          %v865 = vld [vmem:[%s3 + $0x8] sm:$0xff]
          %v866 = vld [vmem:[%s12] sm:$0x1]
          %v867 = vld [vmem:[#allocation2] sm:$0xff]
          %v868 = vld [vmem:[#allocation2 + $0x8] sm:$0xff]
          %v869 = vld [vmem:[%s9] sm:$0xff]
          %v871 = vlaneseq
          %v872 = vshrl.u32 %v871, 7
          %v873 = vsub.s32 0, %v872
          %v874 = vrot.slane %v866, %v873
          %vm876 = vcmask 64512
          %v878 = vsel %vm876, %v862, 0
          %v881 = vsel %vm876, %v863, 0
          %883 = vmatprep.subr.mxu0 0.0
          %884 = vmatpush1.msra.mxu0 %v869
          %885 = vmatprep.subr.mxu0 0.0
          %886 = vmatpush1.msra.mxu0 0.0
          %887 = vmatprep.subr.mxu0 0.0
          %888 = vmatpush1.msra.mxu0 0.0
          %889 = vmatprep.subr.mxu0 0.0
          %890 = vmatpush1.msra.mxu0 0.0
          %891 = vmatprep.subr.mxu0 0.0
          %892 = vmatpush1.msra.mxu0 0.0
          %893 = vmatprep.subr.mxu0 0.0
          %894 = vmatpush1.msra.mxu0 0.0
          %895 = vmatprep.subr.mxu0 0.0
          %896 = vmatpush1.msra.mxu0 0.0
          %897 = vmatprep.subr.mxu0 0.0
          %898 = vmatpush1.msra.mxu0 0.0
          %899 = vmatprep.subr.mxu0 0.0
          %900 = vmatpush1.msra.mxu0 0.0
          %901 = vmatprep.subr.mxu0 0.0
          %902 = vmatpush1.msra.mxu0 0.0
          %903 = vmatprep.subr.mxu0 0.0
          %904 = vmatpush1.msra.mxu0 0.0
          %905 = vmatprep.subr.mxu0 0.0
          %906 = vmatpush1.msra.mxu0 0.0
          %907 = vmatprep.subr.mxu0 0.0
          %908 = vmatpush1.msra.mxu0 0.0
          %909 = vmatprep.subr.mxu0 0.0
          %910 = vmatpush1.msra.mxu0 0.0
          %911 = vmatprep.subr.mxu0 0.0
          %912 = vmatpush1.msra.mxu0 0.0
          %913 = vmatprep.subr.mxu0 0.0
          %914 = vmatpush1.msra.mxu0 0.0
          %915 = vmatprep.subr.mxu0 0.0
          %916 = vmatpush1.msra.mxu0 0.0
          %917 = vmatprep.subr.mxu0 0.0
          %918 = vmatpush1.msra.mxu0 0.0
          %919 = vmatprep.subr.mxu0 0.0
          %920 = vmatpush1.msra.mxu0 0.0
          %921 = vmatprep.subr.mxu0 0.0
          %922 = vmatpush1.msra.mxu0 0.0
          %923 = vmatprep.subr.mxu0 0.0
          %924 = vmatpush1.msra.mxu0 0.0
          %925 = vmatprep.subr.mxu0 0.0
          %926 = vmatpush1.msra.mxu0 0.0
          %927 = vmatprep.subr.mxu0 0.0
          %928 = vmatpush1.msra.mxu0 0.0
          %929 = vmatprep.subr.mxu0 0.0
          %930 = vmatpush1.msra.mxu0 0.0
          %931 = vmatprep.subr.mxu0 0.0
          %932 = vmatpush1.msra.mxu0 0.0
          %933 = vmatprep.subr.mxu0 0.0
          %934 = vmatpush1.msra.mxu0 0.0
          %935 = vmatprep.subr.mxu0 0.0
          %936 = vmatpush1.msra.mxu0 0.0
          %937 = vmatprep.subr.mxu0 0.0
          %938 = vmatpush1.msra.mxu0 0.0
          %939 = vmatprep.subr.mxu0 0.0
          %940 = vmatpush1.msra.mxu0 0.0
          %941 = vmatprep.subr.mxu0 0.0
          %942 = vmatpush1.msra.mxu0 0.0
          %943 = vmatprep.subr.mxu0 0.0
          %944 = vmatpush1.msra.mxu0 0.0
          %945 = vmatprep.subr.mxu0 0.0
          %946 = vmatpush1.msra.mxu0 0.0
          %947 = vmatprep.mubr.f32.mxu0 0.0
          %948 = vmatmul.mubr.f32.gmra.mrb[0].mxu0 %v878
          %v949 = vpop.f32.mrb[0].mxu0
          %v950 = vadd.f32 %v874, %v949
          %v951 = vpop.f32.mrb[0].mxu0
          %952 = vmatprep.mubr.f32.mxu0 0.0
          %953 = vmatmul.mubr.f32.gmra.mrb[0].mxu0 %v881
          %v954 = vpop.f32.mrb[0].mxu0
          %v955 = vadd.f32 %v874, %v954
          %v956 = vpop.f32.mrb[0].mxu0
          %957 = vdwg.mxu0
          %v958 = vadd.f32 %v867, %v950
          %v959 = vadd.f32 %v868, %v955
          %vm960 = vcmask 392192
          %961 = vst.msk [vmem:[#allocation2] sm:$0xff] %vm960, %v958
          %962 = vst.msk [vmem:[#allocation2 + $0x8] sm:$0xff] %vm960, %v959
          %v963 = vld [vmem:[#allocation2] sm:$0xff]
          %v964 = vld [vmem:[#allocation2 + $0x8] sm:$0xff]
          %v965 = vld [vmem:[%s10] sm:$0xff]
          %v966 = vld [vmem:[%s10 + $0x8] sm:$0xff]
          %967 = vrot.lane.b32.xlu0 %v874, 80
          %v968 = vpop.permute.xlu0 %967
          %vm970 = vcmask 130048
          %v972 = vsel %vm970, %v864, 0
          %v975 = vsel %vm970, %v865, 0
          %977 = vmatprep.subr.mxu0 0.0
          %978 = vmatpush1.msra.mxu0 %v965
          %979 = vmatprep.subr.mxu0 0.0
          %980 = vmatpush1.msra.mxu0 %v966
          %981 = vmatprep.subr.mxu0 0.0
          %982 = vmatpush1.msra.mxu0 0.0
          %983 = vmatprep.subr.mxu0 0.0
          %984 = vmatpush1.msra.mxu0 0.0
          %985 = vmatprep.subr.mxu0 0.0
          %986 = vmatpush1.msra.mxu0 0.0
          %987 = vmatprep.subr.mxu0 0.0
          %988 = vmatpush1.msra.mxu0 0.0
          %989 = vmatprep.subr.mxu0 0.0
          %990 = vmatpush1.msra.mxu0 0.0
          %991 = vmatprep.subr.mxu0 0.0
          %992 = vmatpush1.msra.mxu0 0.0
          %993 = vmatprep.subr.mxu0 0.0
          %994 = vmatpush1.msra.mxu0 0.0
          %995 = vmatprep.subr.mxu0 0.0
          %996 = vmatpush1.msra.mxu0 0.0
          %997 = vmatprep.subr.mxu0 0.0
          %998 = vmatpush1.msra.mxu0 0.0
          %999 = vmatprep.subr.mxu0 0.0
          %1000 = vmatpush1.msra.mxu0 0.0
          %1001 = vmatprep.subr.mxu0 0.0
          %1002 = vmatpush1.msra.mxu0 0.0
          %1003 = vmatprep.subr.mxu0 0.0
          %1004 = vmatpush1.msra.mxu0 0.0
          %1005 = vmatprep.subr.mxu0 0.0
          %1006 = vmatpush1.msra.mxu0 0.0
          %1007 = vmatprep.subr.mxu0 0.0
          %1008 = vmatpush1.msra.mxu0 0.0
          %1009 = vmatprep.subr.mxu0 0.0
          %1010 = vmatpush1.msra.mxu0 0.0
          %1011 = vmatprep.subr.mxu0 0.0
          %1012 = vmatpush1.msra.mxu0 0.0
          %1013 = vmatprep.subr.mxu0 0.0
          %1014 = vmatpush1.msra.mxu0 0.0
          %1015 = vmatprep.subr.mxu0 0.0
          %1016 = vmatpush1.msra.mxu0 0.0
          %1017 = vmatprep.subr.mxu0 0.0
          %1018 = vmatpush1.msra.mxu0 0.0
          %1019 = vmatprep.subr.mxu0 0.0
          %1020 = vmatpush1.msra.mxu0 0.0
          %1021 = vmatprep.subr.mxu0 0.0
          %1022 = vmatpush1.msra.mxu0 0.0
          %1023 = vmatprep.subr.mxu0 0.0
          %1024 = vmatpush1.msra.mxu0 0.0
          %1025 = vmatprep.subr.mxu0 0.0
          %1026 = vmatpush1.msra.mxu0 0.0
          %1027 = vmatprep.subr.mxu0 0.0
          %1028 = vmatpush1.msra.mxu0 0.0
          %1029 = vmatprep.subr.mxu0 0.0
          %1030 = vmatpush1.msra.mxu0 0.0
          %1031 = vmatprep.subr.mxu0 0.0
          %1032 = vmatpush1.msra.mxu0 0.0
          %1033 = vmatprep.subr.mxu0 0.0
          %1034 = vmatpush1.msra.mxu0 0.0
          %1035 = vmatprep.subr.mxu0 0.0
          %1036 = vmatpush1.msra.mxu0 0.0
          %1037 = vmatprep.subr.mxu0 0.0
          %1038 = vmatpush1.msra.mxu0 0.0
          %1039 = vmatprep.subr.mxu0 0.0
          %1040 = vmatpush1.msra.mxu0 0.0
          %1041 = vmatprep.mubr.f32.mxu0 0.0
          %1042 = vmatmul.mubr.f32.gmra.mrb[0].mxu0 %v972
          %v1043 = vpop.f32.mrb[0].mxu0
          %v1044 = vadd.f32 %v968, %v1043
          %v1045 = vpop.f32.mrb[0].mxu0
          %1046 = vmatprep.mubr.f32.mxu0 0.0
          %1047 = vmatmul.mubr.f32.gmra.mrb[0].mxu0 %v975
          %v1048 = vpop.f32.mrb[0].mxu0
          %v1049 = vadd.f32 %v968, %v1048
          %v1050 = vpop.f32.mrb[0].mxu0
          %1051 = vdwg.mxu0
          %1054 = vrot.lane.b32.xlu0 %v1044, 48
          %v1055 = vpop.permute.xlu0 %1054
          %1056 = vrot.lane.b32.xlu0 %v1049, 48
          %v1057 = vpop.permute.xlu0 %1056
          %v1060 = vadd.f32 %v963, %v1055
          %v1061 = vadd.f32 %v964, %v1057
          %vm1062 = vcmask 654720
          %1063 = vst.msk [vmem:[#allocation2] sm:$0xff] %vm1062, %v1060
          %1064 = vst.msk [vmem:[#allocation2 + $0x8] sm:$0xff] %vm1062, %v1061
          %v1065 = vld [vmem:[#allocation2] sm:$0xff]
          %v1066 = vld [vmem:[#allocation2 + $0x8] sm:$0xff]
          %1069 = vrot.lane.b32.xlu0 %v1065, 80
          %v1070 = vpop.permute.xlu0 %1069
          %1071 = vrot.lane.b32.xlu0 %v1066, 80
          %v1072 = vpop.permute.xlu0 %1071
          %v1075 = vadd.f32 %v1065, %v1070
          %v1076 = vadd.f32 %v1066, %v1072
          %v1077 = vxor.u32 %v1075, 2147483648
          %v1078 = vxor.u32 %v1076, 2147483648
          %v1079 = vmul.f32 %v1077, 1.442695
          %v1080 = vpow.pop %v1079
          %v1081 = vmul.f32 %v1078, 1.442695
          %v1082 = vpow.pop %v1081
          %v1083 = vadd.f32 %v1080, 1.0
          %v1084 = vadd.f32 %v1082, 1.0
          %v1085 = vrcp.pop %v1083
          %v1086 = vmul.f32 1.0, %v1085
          %v1087 = vrcp.pop %v1084
          %v1088 = vmul.f32 1.0, %v1087
          %1091 = vrot.lane.b32.xlu0 %v1086, 112
          %v1092 = vpop.permute.xlu0 %1091
          %1093 = vrot.lane.b32.xlu0 %v1088, 112
          %v1094 = vpop.permute.xlu0 %1093
          %v1097 = vmul.f32 %v864, %v1092
          %v1098 = vmul.f32 %v865, %v1094
          %1099 = vst.msk [vmem:[#allocation3] sm:$0xff] %vm970, %v1097
          %1100 = vst.msk [vmem:[#allocation3 + $0x8] sm:$0xff] %vm970, %v1098
          %1101 = vst.msk [vmem:[#allocation4] sm:$0xff] %vm970, %v1086
          %1102 = vst.msk [vmem:[#allocation4 + $0x8] sm:$0xff] %vm970, %v1088
          %v1103 = vld [vmem:[#allocation2] sm:$0xff]
          %v1104 = vld [vmem:[#allocation2 + $0x8] sm:$0xff]
          %v1105 = vld [vmem:[%s11] sm:$0xff]
          %v1106 = vld [vmem:[%s11 + $0x8] sm:$0xff]
          %1107 = vrot.lane.b32.xlu0 %v874, 48
          %v1108 = vpop.permute.xlu0 %1107
          %v1111 = vsel %vm970, %v1097, 0
          %v1114 = vsel %vm970, %v1098, 0
          %1116 = vmatprep.subr.mxu0 0.0
          %1117 = vmatpush1.msra.mxu0 %v1105
          %1118 = vmatprep.subr.mxu0 0.0
          %1119 = vmatpush1.msra.mxu0 %v1106
          %1120 = vmatprep.subr.mxu0 0.0
          %1121 = vmatpush1.msra.mxu0 0.0
          %1122 = vmatprep.subr.mxu0 0.0
          %1123 = vmatpush1.msra.mxu0 0.0
          %1124 = vmatprep.subr.mxu0 0.0
          %1125 = vmatpush1.msra.mxu0 0.0
          %1126 = vmatprep.subr.mxu0 0.0
          %1127 = vmatpush1.msra.mxu0 0.0
          %1128 = vmatprep.subr.mxu0 0.0
          %1129 = vmatpush1.msra.mxu0 0.0
          %1130 = vmatprep.subr.mxu0 0.0
          %1131 = vmatpush1.msra.mxu0 0.0
          %1132 = vmatprep.subr.mxu0 0.0
          %1133 = vmatpush1.msra.mxu0 0.0
          %1134 = vmatprep.subr.mxu0 0.0
          %1135 = vmatpush1.msra.mxu0 0.0
          %1136 = vmatprep.subr.mxu0 0.0
          %1137 = vmatpush1.msra.mxu0 0.0
          %1138 = vmatprep.subr.mxu0 0.0
          %1139 = vmatpush1.msra.mxu0 0.0
          %1140 = vmatprep.subr.mxu0 0.0
          %1141 = vmatpush1.msra.mxu0 0.0
          %1142 = vmatprep.subr.mxu0 0.0
          %1143 = vmatpush1.msra.mxu0 0.0
          %1144 = vmatprep.subr.mxu0 0.0
          %1145 = vmatpush1.msra.mxu0 0.0
          %1146 = vmatprep.subr.mxu0 0.0
          %1147 = vmatpush1.msra.mxu0 0.0
          %1148 = vmatprep.subr.mxu0 0.0
          %1149 = vmatpush1.msra.mxu0 0.0
          %1150 = vmatprep.subr.mxu0 0.0
          %1151 = vmatpush1.msra.mxu0 0.0
          %1152 = vmatprep.subr.mxu0 0.0
          %1153 = vmatpush1.msra.mxu0 0.0
          %1154 = vmatprep.subr.mxu0 0.0
          %1155 = vmatpush1.msra.mxu0 0.0
          %1156 = vmatprep.subr.mxu0 0.0
          %1157 = vmatpush1.msra.mxu0 0.0
          %1158 = vmatprep.subr.mxu0 0.0
          %1159 = vmatpush1.msra.mxu0 0.0
          %1160 = vmatprep.subr.mxu0 0.0
          %1161 = vmatpush1.msra.mxu0 0.0
          %1162 = vmatprep.subr.mxu0 0.0
          %1163 = vmatpush1.msra.mxu0 0.0
          %1164 = vmatprep.subr.mxu0 0.0
          %1165 = vmatpush1.msra.mxu0 0.0
          %1166 = vmatprep.subr.mxu0 0.0
          %1167 = vmatpush1.msra.mxu0 0.0
          %1168 = vmatprep.subr.mxu0 0.0
          %1169 = vmatpush1.msra.mxu0 0.0
          %1170 = vmatprep.subr.mxu0 0.0
          %1171 = vmatpush1.msra.mxu0 0.0
          %1172 = vmatprep.subr.mxu0 0.0
          %1173 = vmatpush1.msra.mxu0 0.0
          %1174 = vmatprep.subr.mxu0 0.0
          %1175 = vmatpush1.msra.mxu0 0.0
          %1176 = vmatprep.subr.mxu0 0.0
          %1177 = vmatpush1.msra.mxu0 0.0
          %1178 = vmatprep.subr.mxu0 0.0
          %1179 = vmatpush1.msra.mxu0 0.0
          %1180 = vmatprep.mubr.f32.mxu0 0.0
          %1181 = vmatmul.mubr.f32.gmra.mrb[0].mxu0 %v1111
          %v1182 = vpop.f32.mrb[0].mxu0
          %v1183 = vadd.f32 %v1108, %v1182
          %v1184 = vpop.f32.mrb[0].mxu0
          %1185 = vmatprep.mubr.f32.mxu0 0.0
          %1186 = vmatmul.mubr.f32.gmra.mrb[0].mxu0 %v1114
          %v1187 = vpop.f32.mrb[0].mxu0
          %v1188 = vadd.f32 %v1108, %v1187
          %v1189 = vpop.f32.mrb[0].mxu0
          %1190 = vdwg.mxu0
          %1193 = vrot.lane.b32.xlu0 %v1183, 80
          %v1194 = vpop.permute.xlu0 %1193
          %1195 = vrot.lane.b32.xlu0 %v1188, 80
          %v1196 = vpop.permute.xlu0 %1195
          %v1199 = vadd.f32 %v1103, %v1194
          %v1200 = vadd.f32 %v1104, %v1196
          %vm1201 = vcmask 786048
          %1202 = vst.msk [vmem:[#allocation2] sm:$0xff] %vm1201, %v1199
          %1203 = vst.msk [vmem:[#allocation2 + $0x8] sm:$0xff] %vm1201, %v1200
        $region94: #{tpu_custom_call.1} parent=63 // pred_fallthru
          _
        %p1204 = scmp.eq.s32.totalorder %s38, 1
        // Predicated region
        $region95: #{tpu_custom_call.1} parent=63 // pred_check
          %p1205 = pneg %p1204
        $region96: #{tpu_custom_call.1} parent=63 // pred_check_branch
          %1207 = sbr.rel (%p1205) target = $region98
        $region97: #{tpu_custom_call.1} parent=63 // pred_region
          loop: start=0, step=1, limit=32
          $region99: #{tpu_custom_call.1} parent=97 // loop_pre_header
            _
          $region100: #{tpu_custom_call.1} parent=97 // loop_header
            %s1209 = sphi 0, %s1213
            %p1210 = scmp.ge.s32.totalorder %s1209, 32
          $region101: #{tpu_custom_call.1} parent=97 // loop_header_branch
            %1212 = sbr.rel (%p1210) target = $region105
          $region102: #{tpu_custom_call.1} parent=97 // loop_body
            %s1214 = sadd.s32 %s424, %s1209
            %s1215 = sld [smem:[#allocation9 + %s1214]]
            %s1216 = scalar_lea.vmem [#allocation3], %s1215
            %v1217 = vld [vmem:[%s1216] sm:$0x1]
            %s1218 = scalar_lea.vmem [#allocation6], %s1209
            %vm1219 = vcmask 122880
            %1220 = vst.msk [vmem:[%s1218] sm:$0x1] %vm1219, %v1217
          $region103: #{tpu_custom_call.1} parent=97 // loop_footer
            %s1213 = sadd.s32 1, %s1209
          $region104: #{tpu_custom_call.1} parent=97 // loop_footer_branch
            %1208 = sbr.rel target = $region100
          $region105: #{tpu_custom_call.1} parent=97 // loop_exit
            _
          %v1221 = vld [vmem:[#allocation6] sm:$0xff]
          %v1222 = vld [vmem:[#allocation6 + $0x8] sm:$0xff]
          %v1223 = vld [vmem:[#allocation6 + $0x10] sm:$0xff]
          %v1224 = vld [vmem:[#allocation6 + $0x18] sm:$0xff]
          %v1225 = vmul.f32 %v1221, %v443
          %v1226 = vmul.f32 %v1222, %v444
          %v1227 = vmul.f32 %v1223, %v445
          %v1228 = vmul.f32 %v1224, %v446
          %v1229 = vld [vmem:[%s7] sm:$0xff]
          %v1230 = vld [vmem:[%s7 + $0x8] sm:$0xff]
          %vm1231 = vcmask 130048
          %v1233 = vsel %vm1231, %v1225, 0
          %v1236 = vsel %vm1231, %v1226, 0
          %v1239 = vsel %vm1231, %v1227, 0
          %v1242 = vsel %vm1231, %v1228, 0
          %1244 = vmatprep.subr.mxu0 0.0
          %1245 = vmatpush1.msra.mxu0 %v1229
          %1246 = vmatprep.subr.mxu0 0.0
          %1247 = vmatpush1.msra.mxu0 %v1230
          %1248 = vmatprep.subr.mxu0 0.0
          %1249 = vmatpush1.msra.mxu0 0.0
          %1250 = vmatprep.subr.mxu0 0.0
          %1251 = vmatpush1.msra.mxu0 0.0
          %1252 = vmatprep.subr.mxu0 0.0
          %1253 = vmatpush1.msra.mxu0 0.0
          %1254 = vmatprep.subr.mxu0 0.0
          %1255 = vmatpush1.msra.mxu0 0.0
          %1256 = vmatprep.subr.mxu0 0.0
          %1257 = vmatpush1.msra.mxu0 0.0
          %1258 = vmatprep.subr.mxu0 0.0
          %1259 = vmatpush1.msra.mxu0 0.0
          %1260 = vmatprep.subr.mxu0 0.0
          %1261 = vmatpush1.msra.mxu0 0.0
          %1262 = vmatprep.subr.mxu0 0.0
          %1263 = vmatpush1.msra.mxu0 0.0
          %1264 = vmatprep.subr.mxu0 0.0
          %1265 = vmatpush1.msra.mxu0 0.0
          %1266 = vmatprep.subr.mxu0 0.0
          %1267 = vmatpush1.msra.mxu0 0.0
          %1268 = vmatprep.subr.mxu0 0.0
          %1269 = vmatpush1.msra.mxu0 0.0
          %1270 = vmatprep.subr.mxu0 0.0
          %1271 = vmatpush1.msra.mxu0 0.0
          %1272 = vmatprep.subr.mxu0 0.0
          %1273 = vmatpush1.msra.mxu0 0.0
          %1274 = vmatprep.subr.mxu0 0.0
          %1275 = vmatpush1.msra.mxu0 0.0
          %1276 = vmatprep.subr.mxu0 0.0
          %1277 = vmatpush1.msra.mxu0 0.0
          %1278 = vmatprep.subr.mxu0 0.0
          %1279 = vmatpush1.msra.mxu0 0.0
          %1280 = vmatprep.subr.mxu0 0.0
          %1281 = vmatpush1.msra.mxu0 0.0
          %1282 = vmatprep.subr.mxu0 0.0
          %1283 = vmatpush1.msra.mxu0 0.0
          %1284 = vmatprep.subr.mxu0 0.0
          %1285 = vmatpush1.msra.mxu0 0.0
          %1286 = vmatprep.subr.mxu0 0.0
          %1287 = vmatpush1.msra.mxu0 0.0
          %1288 = vmatprep.subr.mxu0 0.0
          %1289 = vmatpush1.msra.mxu0 0.0
          %1290 = vmatprep.subr.mxu0 0.0
          %1291 = vmatpush1.msra.mxu0 0.0
          %1292 = vmatprep.subr.mxu0 0.0
          %1293 = vmatpush1.msra.mxu0 0.0
          %1294 = vmatprep.subr.mxu0 0.0
          %1295 = vmatpush1.msra.mxu0 0.0
          %1296 = vmatprep.subr.mxu0 0.0
          %1297 = vmatpush1.msra.mxu0 0.0
          %1298 = vmatprep.subr.mxu0 0.0
          %1299 = vmatpush1.msra.mxu0 0.0
          %1300 = vmatprep.subr.mxu0 0.0
          %1301 = vmatpush1.msra.mxu0 0.0
          %1302 = vmatprep.subr.mxu0 0.0
          %1303 = vmatpush1.msra.mxu0 0.0
          %1304 = vmatprep.subr.mxu0 0.0
          %1305 = vmatpush1.msra.mxu0 0.0
          %1306 = vmatprep.subr.mxu0 0.0
          %1307 = vmatpush1.msra.mxu0 0.0
          %1308 = vmatprep.mubr.f32.mxu0 0.0
          %1309 = vmatmul.mubr.f32.gmra.mrb[0].mxu0 %v1233
          %v1310 = vpop.f32.mrb[0].mxu0
          %v1311 = vadd.f32 0.0, %v1310
          %v1312 = vpop.f32.mrb[0].mxu0
          %1313 = vmatprep.mubr.f32.mxu0 0.0
          %1314 = vmatmul.mubr.f32.gmra.mrb[0].mxu0 %v1236
          %v1315 = vpop.f32.mrb[0].mxu0
          %v1316 = vadd.f32 0.0, %v1315
          %v1317 = vpop.f32.mrb[0].mxu0
          %1318 = vmatprep.mubr.f32.mxu0 0.0
          %1319 = vmatmul.mubr.f32.gmra.mrb[0].mxu0 %v1239
          %v1320 = vpop.f32.mrb[0].mxu0
          %v1321 = vadd.f32 0.0, %v1320
          %v1322 = vpop.f32.mrb[0].mxu0
          %1323 = vmatprep.mubr.f32.mxu0 0.0
          %1324 = vmatmul.mubr.f32.gmra.mrb[0].mxu0 %v1242
          %v1325 = vpop.f32.mrb[0].mxu0
          %v1326 = vadd.f32 0.0, %v1325
          %v1327 = vpop.f32.mrb[0].mxu0
          %1328 = vdwg.mxu0
          %vm1329 = vcmask 654336
          %1330 = vst.msk [vmem:[#allocation7] sm:$0xff] %vm1329, 0.0
          %1331 = vst.msk [vmem:[#allocation7 + $0x8] sm:$0xff] %vm1329, 0.0
          %1332 = vst.msk [vmem:[#allocation7 + $0x10] sm:$0xff] %vm1329, 0.0
          %1333 = vst.msk [vmem:[#allocation7 + $0x18] sm:$0xff] %vm1329, 0.0
          %1338 = vrot.lane.b32.xlu0 %v1311, 80
          %v1339 = vpop.permute.xlu0 %1338
          %1340 = vrot.lane.b32.xlu0 %v1316, 80
          %v1341 = vpop.permute.xlu0 %1340
          %1342 = vrot.lane.b32.xlu0 %v1321, 80
          %v1343 = vpop.permute.xlu0 %1342
          %1344 = vrot.lane.b32.xlu0 %v1326, 80
          %v1345 = vpop.permute.xlu0 %1344
          %vm1350 = vcmask 786048
          %1351 = vst.msk [vmem:[#allocation7] sm:$0xff] %vm1350, %v1339
          %1352 = vst.msk [vmem:[#allocation7 + $0x8] sm:$0xff] %vm1350, %v1341
          %1353 = vst.msk [vmem:[#allocation7 + $0x10] sm:$0xff] %vm1350, %v1343
          %1354 = vst.msk [vmem:[#allocation7 + $0x18] sm:$0xff] %vm1350, %v1345
          loop: start=0, step=1, limit=32
          $region106: #{tpu_custom_call.1} parent=97 // loop_pre_header
            _
          $region107: #{tpu_custom_call.1} parent=97 // loop_header
            %s1356 = sphi 0, %s1360
            %p1357 = scmp.ge.s32.totalorder %s1356, 32
          $region108: #{tpu_custom_call.1} parent=97 // loop_header_branch
            %1359 = sbr.rel (%p1357) target = $region112
          $region109: #{tpu_custom_call.1} parent=97 // loop_body
            %s1361 = sadd.s32 %s424, %s1356
            %s1362 = sld [smem:[#allocation10 + %s1361]]
            %s1363 = scalar_lea.vmem [#allocation2], %s1362
            %v1364 = vld [vmem:[%s1363] sm:$0x1]
            %s1365 = scalar_lea.vmem [#allocation7], %s1356
            %v1366 = vld [vmem:[%s1365] sm:$0x1]
            %v1367 = vadd.f32 %v1364, %v1366
            %vm1368 = vcmask 778240
            %1369 = vst.msk [vmem:[%s1363] sm:$0x1] %vm1368, %v1367
          $region110: #{tpu_custom_call.1} parent=97 // loop_footer
            %s1360 = sadd.s32 1, %s1356
          $region111: #{tpu_custom_call.1} parent=97 // loop_footer_branch
            %1355 = sbr.rel target = $region107
          $region112: #{tpu_custom_call.1} parent=97 // loop_exit
            _
        $region98: #{tpu_custom_call.1} parent=63 // pred_fallthru
          _
        %p1370 = pnand %p1204, %p448
        %p1371 = pneg %p1370
        // Predicated region
        $region113: #{tpu_custom_call.1} parent=63 // pred_check
          _
        $region114: #{tpu_custom_call.1} parent=63 // pred_check_branch
          %1373 = sbr.rel (%p1370) target = $region116
        $region115: #{tpu_custom_call.1} parent=63 // pred_region
          %v1374 = vld [vmem:[%s3] sm:$0xff]
          %v1375 = vld [vmem:[%s3 + $0x8] sm:$0xff]
          %v1376 = vld [vmem:[#allocation4] sm:$0xff]
          %v1377 = vld [vmem:[#allocation4 + $0x8] sm:$0xff]
          %v1378 = vld [vmem:[#allocation2] sm:$0xff]
          %v1379 = vld [vmem:[#allocation2 + $0x8] sm:$0xff]
          %1382 = vrot.lane.b32.xlu0 %v1378, 80
          %v1383 = vpop.permute.xlu0 %1382
          %1384 = vrot.lane.b32.xlu0 %v1379, 80
          %v1385 = vpop.permute.xlu0 %1384
          %v1388 = vadd.f32 %v1378, %v1383
          %v1389 = vadd.f32 %v1379, %v1385
          %v1390 = vtanh.pop %v1388
          %v1391 = vtanh.pop %v1389
          %v1392 = vmul.f32 %v1376, %v1374
          %v1393 = vmul.f32 %v1377, %v1375
          %v1394 = vsub.f32 1.0, %v1376
          %v1395 = vsub.f32 1.0, %v1377
          %1398 = vrot.lane.b32.xlu0 %v1390, 96
          %v1399 = vpop.permute.xlu0 %1398
          %1400 = vrot.lane.b32.xlu0 %v1391, 96
          %v1401 = vpop.permute.xlu0 %1400
          %v1404 = vmul.f32 %v1394, %v1399
          %v1405 = vmul.f32 %v1395, %v1401
          %v1406 = vadd.f32 %v1392, %v1404
          %v1407 = vadd.f32 %v1393, %v1405
          %vm1408 = vcmask 130048
          %1409 = vst.msk [vmem:[#allocation14] sm:$0xff] %vm1408, %v1406
          %1410 = vst.msk [vmem:[#allocation14 + $0x8] sm:$0xff] %vm1408, %v1407
        $region116: #{tpu_custom_call.1} parent=63 // pred_fallthru
          _
        // Predicated region
        $region117: #{tpu_custom_call.1} parent=63 // pred_check
          %p1411 = pneg %p299
        $region118: #{tpu_custom_call.1} parent=63 // pred_check_branch
          %1413 = sbr.rel (%p1411) target = $region120
        $region119: #{tpu_custom_call.1} parent=63 // pred_region
          %s1415 = ssub.s32 256, 256
          %1416 = vsyncadd [#allocation13], %s1415
          %s1417 = sshll.u32 [#allocation14], 4
          %s1418 = int_to_ptr.vmem [resolvable:$true] %s1417
          %1423 = dma.vmem_to_hbm [thread:$0]  %s1418, 256, %s13, [#allocation13], 128, 128, 8
        $region120: #{tpu_custom_call.1} parent=63 // pred_fallthru
          _
        // Predicated region
        $region121: #{tpu_custom_call.1} parent=63 // pred_check
          %p1424 = pneg %p299
        $region122: #{tpu_custom_call.1} parent=63 // pred_check_branch
          %1426 = sbr.rel (%p1424) target = $region124
        $region123: #{tpu_custom_call.1} parent=63 // pred_region
          %1427 = dma.done [#allocation13], 256
        $region124: #{tpu_custom_call.1} parent=63 // pred_fallthru
          _
      $region64: #{tpu_custom_call.1} parent=5 // pred_fallthru
        _
      %p1428 = scmp.le.s32.totalorder 2, %s29
      // Predicated region
      $region125: #{tpu_custom_call.1} parent=5 // pred_check
        %p1429 = pneg %p1428
      $region126: #{tpu_custom_call.1} parent=5 // pred_check_branch
        %1431 = sbr.rel (%p1429) target = $region128
      $region127: #{tpu_custom_call.1} parent=5 // pred_region
        %s1432 = ssub.s32 %s29, 2
      $region128: #{tpu_custom_call.1} parent=5 // pred_fallthru
        _
    $region6: #{tpu_custom_call.1} parent=1 // loop_footer
      %s33 = sadd.s32 1, %s29
    $region7: #{tpu_custom_call.1} parent=1 // loop_footer_branch
      %28 = sbr.rel target = $region3
    $region8: #{tpu_custom_call.1} parent=1 // loop_exit
      _
    %1433 = vsyncpa [#allocation12], 1
    %s1434 = scalar_lea.sflag [#allocation12], 1
    %1435 = vsyncpa %s1434, 1
    %1436 = vsyncpa [#allocation13], 1
    %s1437 = scalar_lea.sflag [#allocation13], 1
    %1438 = vsyncpa %s1437, 1

</llo_original>
